<compile_context>
chip_gen: v5e
topology: v5e:2x2
jax: 0.10.0
libtpu: 0.0.40
codegen_flags: <defaults>
</compile_context>

<pallas_src>
import jax
import jax.numpy as jnp
from jax.experimental import pallas as pl
from jax.experimental.pallas import tpu as pltpu

_MIB = 1024 * 1024


def _round_up(x, m):
    return (x + m - 1) // m * m


# ---------------------------------------------------------------------------
# Kernel
# ---------------------------------------------------------------------------
def seq2seq_kernel(emb_ref, w_enc_ref, b_enc_ref, w_dec_ref, b_dec_ref,
                   w_lin_ref, b_lin_ref, out_ref, d_scratch):
    """Grid = (batch tiles i, vocab tiles j).

      j == 0 : encoder matmul + L2 row-norm + decoder matmul for batch tile i;
               result is cast to the compute dtype (bf16) before the
               (tb, S*H_pad) -> (tb*S, H_pad) relayout and kept in VMEM.
      all j  : (tb*S, H_pad) @ (H_pad, tn) output-projection tile, lane-dense
               store into the j-th vocab slab of the output.
    """
    j = pl.program_id(1)

    @pl.when(j == 0)
    def _():
        # ---- encode: hidden = emb @ W_enc + b_enc, then L2-normalize rows ---
        h = jnp.dot(emb_ref[...], w_enc_ref[...],
                    preferred_element_type=jnp.float32) + b_enc_ref[...]
        # rsqrt goes to the EUP slot; padded hidden lanes are exactly zero so
        # the norm equals the unpadded norm.  No epsilon, matching torch.div
        # (an all-zero hidden row would NaN in PyTorch too).  Padded *batch*
        # rows keep b_enc and therefore stay finite; they are sliced off.
        inv = jax.lax.rsqrt(jnp.sum(h * h, axis=1, keepdims=True))
        h = (h * inv).astype(w_dec_ref.dtype)

        # ---- decode: output = hidden @ W_dec + b_dec  -> (tb, S*H_pad) -----
        d = jnp.dot(h, w_dec_ref[...],
                    preferred_element_type=jnp.float32) + b_dec_ref[...]
        # Cast first (half the bytes through the relayout), then reshape.
        # H_pad is a multiple of 128 so the reshape is tile-aligned; it runs
        # once per batch tile and is amortized over all vocab tiles.
        d_scratch[...] = d.astype(d_scratch.dtype).reshape(d_scratch.shape)

    # ---- output projection for vocab tile j: (tb*S, H_pad) @ (H_pad, tn) ---
    dec = jnp.dot(d_scratch[...], w_lin_ref[...],
                  preferred_element_type=jnp.float32) + b_lin_ref[...]
    out_ref[...] = dec.astype(out_ref.dtype)


# ---------------------------------------------------------------------------
# Geometry / budget helpers
# ---------------------------------------------------------------------------
def _vmem_budget_bytes():
    """Per-core VMEM capacity and a derived scoped limit (~80% of physical)."""
    capacity = 64 * _MIB  # conservative fallback: fits every TPU generation
    try:
        info = pltpu.get_tpu_info()
        cap = getattr(info, "vmem_capacity_bytes", None)
        if cap:
            capacity = int(cap)
    except Exception:
        pass
    return capacity, int(capacity * 0.8)


def _footprint_bytes(tb, tn, S, E, H_pad, cdt_size, out_size):
    """Estimated VMEM footprint (residents single-buffered, streams double)."""
    f = 2 * tb * (S * E) * cdt_size               # embeddings (double-buffered)
    f += (S * E) * H_pad * cdt_size               # W_enc (resident)
    f += H_pad * 4                                # b_enc (f32)
    f += H_pad * (S * H_pad) * cdt_size           # W_dec (resident)
    f += (S * H_pad) * 4                          # b_dec (f32)
    f += 2 * (H_pad * tn * cdt_size + tn * 4)     # W_lin / b_lin (streamed)
    f += 2 * tb * S * tn * out_size               # output tile (double-buffered)
    f += tb * S * H_pad * cdt_size                # decoder scratch (bf16)
    return f


def _choose_tiles(B, S, E, H_pad, V_pad, vmem_capacity, budget,
                  cdt_size, out_size):
    # tb up to 256 on 128-MiB parts (fills the 256-tall v6e MXU and halves
    # W_lin re-reads), 128 on 64-MiB v7x.
    tb_cap = 256 if vmem_capacity >= 128 * _MIB else 128
    tb = min(tb_cap, _round_up(B, 8))
    tn_cands = sorted({t for t in (V_pad, 4096, 2048, 1024, 512, 256, 128)
                       if t <= V_pad and V_pad % t == 0}, reverse=True)
    tn = None
    while tn is None:
        for cand in tn_cands:
            if _footprint_bytes(tb, cand, S, E, H_pad,
                                cdt_size, out_size) <= budget:
                tn = cand
                break
        if tn is None:
            if tb <= 8:
                # TODO(synk): K-tile / stream W_enc and W_dec (extra grid axis
                # over the contraction / per-S slabs into the scratch) when
                # the residents alone outgrow the per-core VMEM budget
                # (v7x: 64 MiB).
                tn = 128
                break
            tb = max(8, _round_up(tb // 2, 8))

    # Guarantee >= 2 batch tiles when B allows it so both v7x TensorCores get
    # work under dimension_semantics=("parallel", ...).
    B_pad = _round_up(B, tb)
    while B_pad // tb < 2 and tb > 8:
        tb = max(8, _round_up(tb // 2, 8))
        B_pad = _round_up(B, tb)
    return tb, tn, B_pad


# ---------------------------------------------------------------------------
# Parameter preparation (one-time) and forward wrapper
# ---------------------------------------------------------------------------
def prepare_params(params, compute_dtype=jnp.bfloat16):
    """One-time padding / casting of the weights, hoisted out of the forward
    call so repeated invocations pay no HBM repacking traffic."""
    emb_table, w_enc, b_enc, w_dec, b_dec, w_lin, b_lin = params
    E = emb_table.shape[1]
    SE, H = w_enc.shape
    S = SE // E
    V = w_lin.shape[1]
    H_pad = _round_up(H, 128)                    # lane-align hidden dim
    V_pad = _round_up(V, 128)                    # lane-dense output stores

    # Zero-padded weights/biases => padded lanes contribute exactly zero.
    w_enc_p = jnp.pad(w_enc, ((0, 0), (0, H_pad - H))).astype(compute_dtype)
    b_enc_p = jnp.pad(b_enc, ((0, 0), (0, H_pad - H)))
    w_dec_p = jnp.pad(w_dec.reshape(H, S, H),
                      ((0, H_pad - H), (0, 0), (0, H_pad - H)))
    w_dec_p = w_dec_p.reshape(H_pad, S * H_pad).astype(compute_dtype)
    b_dec_p = jnp.pad(b_dec.reshape(1, S, H),
                      ((0, 0), (0, 0), (0, H_pad - H))).reshape(1, S * H_pad)
    w_lin_p = jnp.pad(w_lin, ((0, H_pad - H), (0, V_pad - V))).astype(compute_dtype)
    b_lin_p = jnp.pad(b_lin, ((0, 0), (0, V_pad - V)))

    return dict(emb_table=emb_table, w_enc=w_enc_p, b_enc=b_enc_p,
                w_dec=w_dec_p, b_dec=b_dec_p, w_lin=w_lin_p, b_lin=b_lin_p,
                S=S, E=E, H=H, V=V, H_pad=H_pad, V_pad=V_pad,
                compute_dtype=compute_dtype)


def seq2seq_forward(indices, prepared, out_dtype=jnp.float32):
    S, E = prepared["S"], prepared["E"]
    H_pad, V_pad, V = prepared["H_pad"], prepared["V_pad"], prepared["V"]
    cdt = prepared["compute_dtype"]
    B = indices.shape[0]

    cdt_size = jnp.dtype(cdt).itemsize
    out_size = jnp.dtype(out_dtype).itemsize
    vmem_capacity, vmem_limit = _vmem_budget_bytes()
    tb, tn, B_pad = _choose_tiles(B, S, E, H_pad, V_pad, vmem_capacity,
                                  int(vmem_limit * 0.9), cdt_size, out_size)
    grid = (B_pad // tb, V_pad // tn)

    # ---- glue in plain JAX: embedding gather + batch-row zero padding ------
    emb = jnp.take(prepared["emb_table"], indices, axis=0).reshape(B, S * E)
    emb = jnp.pad(emb, ((0, B_pad - B), (0, 0))).astype(cdt)

    operands = (emb, prepared["w_enc"], prepared["b_enc"], prepared["w_dec"],
                prepared["b_dec"], prepared["w_lin"], prepared["b_lin"])

    # ---- advisory cost estimate (W_lin/b_lin re-streamed per batch tile) ---
    n_btiles = B_pad // tb
    flops = 2 * (B_pad * (S * E) * H_pad             # encoder
                 + B_pad * H_pad * (S * H_pad)       # decoder
                 + (B_pad * S) * H_pad * V_pad)      # output projection
    bytes_accessed = sum(int(x.size) * x.dtype.itemsize for x in operands[:5])
    bytes_accessed += n_btiles * sum(int(x.size) * x.dtype.itemsize
                                     for x in operands[5:])
    bytes_accessed += B_pad * S * V_pad * out_size
    cost = pl.CostEstimate(flops=int(flops), transcendentals=int(B_pad),
                           bytes_accessed=int(bytes_accessed))

    def build(single_buffer_residents):
        def resident(shape):
            # Constant-index blocks never change; a single pipeline buffer is
            # enough (halves their VMEM footprint).
            if single_buffer_residents:
                return pl.BlockSpec(shape, lambda i, j: (0, 0),
                                    pipeline_mode=pl.Buffered(1))
            return pl.BlockSpec(shape, lambda i, j: (0, 0))

        return pl.pallas_call(
            seq2seq_kernel,
            out_shape=jax.ShapeDtypeStruct((B_pad * S, V_pad), out_dtype),
            grid_spec=pltpu.PrefetchScalarGridSpec(
                num_scalar_prefetch=0,
                grid=grid,
                in_specs=[
                    pl.BlockSpec((tb, S * E), lambda i, j: (i, 0)),    # embeddings
                    resident((S * E, H_pad)),                          # W_enc (resident)
                    resident((1, H_pad)),                              # b_enc
                    resident((H_pad, S * H_pad)),                      # W_dec (resident)
                    resident((1, S * H_pad)),                          # b_dec
                    pl.BlockSpec((H_pad, tn), lambda i, j: (0, j)),    # W_lin (streamed)
                    pl.BlockSpec((1, tn), lambda i, j: (0, j)),        # b_lin (streamed)
                ],
                out_specs=pl.BlockSpec((tb * S, tn), lambda i, j: (i, j)),
                scratch_shapes=[pltpu.VMEM((tb * S, H_pad), cdt)],
            ),
            compiler_params=pltpu.CompilerParams(
                dimension_semantics=("parallel", "arbitrary"),
                vmem_limit_bytes=int(vmem_limit),
            ),
            cost_estimate=cost,
        )

    try:
        out_pad = jax.block_until_ready(
            build(single_buffer_residents=True)(*operands))
    except Exception:
        # This JAX build rejects Buffered(1) on the main pipeline: fall back
        # to default double-buffered residents (correctness identical).
        out_pad = build(single_buffer_residents=False)(*operands)

    # Rows are ordered b*S + s, so the first B*S rows are exactly the real
    # batch; slice off batch-row and vocab-lane padding.
    return out_pad[:B * S, :V]


# ---------------------------------------------------------------------------
# Init + references
# ---------------------------------------------------------------------------
def init_params(key, ntokens, emsize, seqlen, nhidden):
    """Deterministic synthetic init matching Seq2Seq.init_weights shapes.

    PyTorch nn.Linear stores weight as (out, in); we store (in, out) so the
    kernel computes x @ W + b directly.  All weights uniform(-0.1, 0.1);
    final linear bias is zero (as in init_weights)."""
    initrange = 0.1
    ks = jax.random.split(key, 6)
    emb_table = jax.random.uniform(ks[0], (ntokens, emsize),
                                   minval=-initrange, maxval=initrange,
                                   dtype=jnp.float32)
    w_enc = jax.random.uniform(ks[1], (seqlen * emsize, nhidden),
                               minval=-initrange, maxval=initrange,
                               dtype=jnp.float32)
    b_enc = jax.random.uniform(ks[2], (1, nhidden),
                               minval=-initrange, maxval=initrange,
                               dtype=jnp.float32)
    w_dec = jax.random.uniform(ks[3], (nhidden, seqlen * nhidden),
                               minval=-initrange, maxval=initrange,
                               dtype=jnp.float32)
    b_dec = jax.random.uniform(ks[4], (1, seqlen * nhidden),
                               minval=-initrange, maxval=initrange,
                               dtype=jnp.float32)
    w_lin = jax.random.uniform(ks[5], (nhidden, ntokens),
                               minval=-initrange, maxval=initrange,
                               dtype=jnp.float32)
    b_lin = jnp.zeros((1, ntokens), dtype=jnp.float32)
    return emb_table, w_enc, b_enc, w_dec, b_dec, w_lin, b_lin


def reference_forward_f32(indices, params):
    """Pure-f32 JAX reference mirroring the PyTorch forward exactly."""
    emb_table, w_enc, b_enc, w_dec, b_dec, w_lin, b_lin = params
    b, seqlen = indices.shape
    emsize = emb_table.shape[1]
    nhidden = w_enc.shape[1]
    ntokens = w_lin.shape[1]
    emb = jnp.take(emb_table, indices, axis=0).reshape(b, seqlen * emsize)
    hidden = emb @ w_enc + b_enc
    norms = jnp.linalg.norm(hidden, ord=2, axis=1, keepdims=True)
    hidden = hidden / norms
    output = (hidden @ w_dec + b_dec).reshape(b, seqlen, nhidden)
    decoded = output @ w_lin + b_lin
    return decoded.reshape(-1, ntokens)


def reference_forward_matched(indices, params, compute_dtype=jnp.bfloat16):
    """Reference with the same bf16-operand / f32-accumulate casts as the kernel."""
    emb_table, w_enc, b_enc, w_dec, b_dec, w_lin, b_lin = params
    b, seqlen = indices.shape
    emsize = emb_table.shape[1]
    nhidden = w_enc.shape[1]
    ntokens = w_lin.shape[1]
    emb = jnp.take(emb_table, indices, axis=0).reshape(b, seqlen * emsize)
    emb = emb.astype(compute_dtype)
    h = jnp.dot(emb, w_enc.astype(compute_dtype),
                preferred_element_type=jnp.float32) + b_enc
    h = h * jax.lax.rsqrt(jnp.sum(h * h, axis=1, keepdims=True))
    d = jnp.dot(h.astype(compute_dtype), w_dec.astype(compute_dtype),
                preferred_element_type=jnp.float32) + b_dec
    d = d.astype(compute_dtype).reshape(b * seqlen, nhidden)
    dec = jnp.dot(d, w_lin.astype(compute_dtype),
                  preferred_element_type=jnp.float32) + b_lin
    return dec.reshape(-1, ntokens)


if __name__ == "__main__":
    # Small shapes consistent with the module.  (At these toy sizes the MXU is
    # heavily under-filled; real workloads should batch >= 128 rows.)
    B, SEQLEN, EMSIZE, NHIDDEN, NTOKENS = 2, 8, 16, 32, 64

    key = jax.random.PRNGKey(0)
    pkey, ikey = jax.random.split(key)
    params = init_params(pkey, NTOKENS, EMSIZE, SEQLEN, NHIDDEN)
    indices = jax.random.randint(ikey, (B, SEQLEN), 0, NTOKENS, dtype=jnp.int32)

    prepared = prepare_params(params)   # one-time weight padding / bf16 cast

    out = jax.block_until_ready(seq2seq_forward(indices, prepared))
    assert out.shape == (B * SEQLEN, NTOKENS)
    assert out.dtype == jnp.float32

    ref_matched = reference_forward_matched(indices, params)
    ref_f32 = reference_forward_f32(indices, params)

    # Tight check against the cast-matched reference; loose check against the
    # exact f32 PyTorch-equivalent reference (bf16 operand rounding only).
    assert jnp.allclose(out, ref_matched, atol=1e-3, rtol=1e-2), (
        float(jnp.max(jnp.abs(out - ref_matched))))
    assert jnp.allclose(out, ref_f32, atol=3e-2, rtol=3e-2), (
        float(jnp.max(jnp.abs(out - ref_f32))))

    # bf16-output path (halves the memory-bound projection writeback);
    # loose check: bf16 storage rounding on top of the matched reference.
    out_bf16 = jax.block_until_ready(
        seq2seq_forward(indices, prepared, out_dtype=jnp.bfloat16))
    assert out_bf16.shape == (B * SEQLEN, NTOKENS)
    assert out_bf16.dtype == jnp.bfloat16
    assert jnp.allclose(out_bf16.astype(jnp.float32), ref_matched,
                        atol=1e-2, rtol=5e-2)

    print("KERNEL_OK")
</pallas_src>

<mosaic_0001>
module attributes {stable_mosaic.version = 11 : i64} {
  func.func @seq2seq_kernel(%arg0: i32, %arg1: i32, %arg2: memref<8x128xbf16, #tpu.memory_space<vmem>>, %arg3: memref<128x128xbf16, #tpu.memory_space<vmem>>, %arg4: memref<1x128xf32, #tpu.memory_space<vmem>>, %arg5: memref<128x1024xbf16, #tpu.memory_space<vmem>>, %arg6: memref<1x1024xf32, #tpu.memory_space<vmem>>, %arg7: memref<128x128xbf16, #tpu.memory_space<vmem>>, %arg8: memref<1x128xf32, #tpu.memory_space<vmem>>, %arg9: memref<64x128xf32, #tpu.memory_space<vmem>>, %arg10: memref<64x128xbf16, #tpu.memory_space<vmem>>) attributes {dimension_semantics = [#tpu.dimension_semantics<parallel>, #tpu.dimension_semantics<arbitrary>], iteration_bounds = array<i64: 1, 1>, scalar_prefetch = 0 : i64, scratch_operands = 1 : i64, tpu.core_type = #tpu.core_type<tc>, window_params = [{transform_indices = @transform_0, window_bounds = array<i64: 8, 128>}, {pipeline_mode = #tpu.pipeline_mode<synchronous>, transform_indices = @transform_1, window_bounds = array<i64: 128, 128>}, {pipeline_mode = #tpu.pipeline_mode<synchronous>, transform_indices = @transform_2, window_bounds = array<i64: 1, 128>}, {pipeline_mode = #tpu.pipeline_mode<synchronous>, transform_indices = @transform_3, window_bounds = array<i64: 128, 1024>}, {pipeline_mode = #tpu.pipeline_mode<synchronous>, transform_indices = @transform_4, window_bounds = array<i64: 1, 1024>}, {transform_indices = @transform_5, window_bounds = array<i64: 128, 128>}, {transform_indices = @transform_6, window_bounds = array<i64: 1, 128>}, {transform_indices = @transform_7, window_bounds = array<i64: 64, 128>}]} {
    %c0_i32 = arith.constant 0 : i32
    %0 = arith.cmpi eq, %arg1, %c0_i32 : i32
    %1 = arith.extui %0 : i1 to i32
    %c0_i32_0 = arith.constant 0 : i32
    %2 = arith.cmpi ne, %1, %c0_i32_0 : i32
    scf.if %2 {
      %c0_8 = arith.constant 0 : index
      %c0_9 = arith.constant 0 : index
      %10 = vector.load %arg2[%c0_8, %c0_9] : memref<8x128xbf16, #tpu.memory_space<vmem>>, vector<8x128xbf16>
      %c0_10 = arith.constant 0 : index
      %c0_11 = arith.constant 0 : index
      %11 = vector.load %arg3[%c0_10, %c0_11] : memref<128x128xbf16, #tpu.memory_space<vmem>>, vector<128x128xbf16>
      %cst_12 = arith.constant dense<0.000000e+00> : vector<8x128xf32>
      %12 = tpu.matmul %10, %11, %cst_12 {dimension_numbers = #tpu.dot_dimension_numbers<[1], [0], [0], [1], [0, 0, 1, 1], [], []>} : vector<8x128xbf16>, vector<128x128xbf16>, vector<8x128xf32> -> vector<8x128xf32>
      %c0_13 = arith.constant 0 : index
      %c0_14 = arith.constant 0 : index
      %13 = vector.load %arg4[%c0_13, %c0_14] : memref<1x128xf32, #tpu.memory_space<vmem>>, vector<1x128xf32>
      %14 = vector.broadcast %13 : vector<1x128xf32> to vector<8x128xf32>
      %15 = arith.addf %12, %14 : vector<8x128xf32>
      %16 = arith.mulf %15, %15 : vector<8x128xf32>
      %cst_15 = arith.constant dense<0.000000e+00> : vector<8xf32>
      %17 = vector.multi_reduction <add>, %16, %cst_15 [1] : vector<8x128xf32> to vector<8xf32>
      %18 = vector.shape_cast %17 : vector<8xf32> to vector<8x1xf32>
      %19 = math.rsqrt %18 : vector<8x1xf32>
      %20 = vector.broadcast %19 : vector<8x1xf32> to vector<8x128xf32>
      %21 = arith.mulf %15, %20 : vector<8x128xf32>
      %22 = arith.truncf %21 : vector<8x128xf32> to vector<8x128xbf16>
      %c0_16 = arith.constant 0 : index
      %c0_17 = arith.constant 0 : index
      %23 = vector.load %arg5[%c0_16, %c0_17] : memref<128x1024xbf16, #tpu.memory_space<vmem>>, vector<128x1024xbf16>
      %cst_18 = arith.constant dense<0.000000e+00> : vector<8x1024xf32>
      %24 = tpu.matmul %22, %23, %cst_18 {dimension_numbers = #tpu.dot_dimension_numbers<[1], [0], [0], [1], [0, 0, 1, 1], [], []>} : vector<8x128xbf16>, vector<128x1024xbf16>, vector<8x1024xf32> -> vector<8x1024xf32>
      %c0_19 = arith.constant 0 : index
      %c0_20 = arith.constant 0 : index
      %25 = vector.load %arg6[%c0_19, %c0_20] : memref<1x1024xf32, #tpu.memory_space<vmem>>, vector<1x1024xf32>
      %26 = vector.broadcast %25 : vector<1x1024xf32> to vector<8x1024xf32>
      %27 = arith.addf %24, %26 : vector<8x1024xf32>
      %28 = arith.truncf %27 : vector<8x1024xf32> to vector<8x1024xbf16>
      %29 = vector.shape_cast %28 : vector<8x1024xbf16> to vector<64x128xbf16>
      %c0_21 = arith.constant 0 : index
      %c0_22 = arith.constant 0 : index
      %30 = vector.load %arg10[%c0_21, %c0_22] : memref<64x128xbf16, #tpu.memory_space<vmem>>, vector<64x128xbf16>
      tpu.vector_store %arg10[%c0_21, %c0_22], %29 {strides = array<i32>} : memref<64x128xbf16, #tpu.memory_space<vmem>>, vector<64x128xbf16>,
    } else {
    }
    %c0 = arith.constant 0 : index
    %c0_1 = arith.constant 0 : index
    %3 = vector.load %arg10[%c0, %c0_1] : memref<64x128xbf16, #tpu.memory_space<vmem>>, vector<64x128xbf16>
    %c0_2 = arith.constant 0 : index
    %c0_3 = arith.constant 0 : index
    %4 = vector.load %arg7[%c0_2, %c0_3] : memref<128x128xbf16, #tpu.memory_space<vmem>>, vector<128x128xbf16>
    %cst = arith.constant dense<0.000000e+00> : vector<64x128xf32>
    %5 = tpu.matmul %3, %4, %cst {dimension_numbers = #tpu.dot_dimension_numbers<[1], [0], [0], [1], [0, 0, 1, 1], [], []>} : vector<64x128xbf16>, vector<128x128xbf16>, vector<64x128xf32> -> vector<64x128xf32>
    %c0_4 = arith.constant 0 : index
    %c0_5 = arith.constant 0 : index
    %6 = vector.load %arg8[%c0_4, %c0_5] : memref<1x128xf32, #tpu.memory_space<vmem>>, vector<1x128xf32>
    %7 = vector.broadcast %6 : vector<1x128xf32> to vector<64x128xf32>
    %8 = arith.addf %5, %7 : vector<64x128xf32>
    %c0_6 = arith.constant 0 : index
    %c0_7 = arith.constant 0 : index
    %9 = vector.load %arg9[%c0_6, %c0_7] : memref<64x128xf32, #tpu.memory_space<vmem>>, vector<64x128xf32>
    tpu.vector_store %arg9[%c0_6, %c0_7], %8 {strides = array<i32>} : memref<64x128xf32, #tpu.memory_space<vmem>>, vector<64x128xf32>,
    return
  }
  func.func @transform_0(%arg0: i32, %arg1: i32) -> (i32, i32) {
    %c0_i32 = arith.constant 0 : i32
    %c0_i32_0 = arith.constant 0 : i32
    return %arg0, %c0_i32 : i32, i32
  }
  func.func @transform_1(%arg0: i32, %arg1: i32) -> (i32, i32) {
    %c0_i32 = arith.constant 0 : i32
    %c0_i32_0 = arith.constant 0 : i32
    %c0_i32_1 = arith.constant 0 : i32
    return %c0_i32, %c0_i32_0 : i32, i32
  }
  func.func @transform_2(%arg0: i32, %arg1: i32) -> (i32, i32) {
    %c0_i32 = arith.constant 0 : i32
    %c0_i32_0 = arith.constant 0 : i32
    %c0_i32_1 = arith.constant 0 : i32
    return %c0_i32, %c0_i32_0 : i32, i32
  }
  func.func @transform_3(%arg0: i32, %arg1: i32) -> (i32, i32) {
    %c0_i32 = arith.constant 0 : i32
    %c0_i32_0 = arith.constant 0 : i32
    %c0_i32_1 = arith.constant 0 : i32
    return %c0_i32, %c0_i32_0 : i32, i32
  }
  func.func @transform_4(%arg0: i32, %arg1: i32) -> (i32, i32) {
    %c0_i32 = arith.constant 0 : i32
    %c0_i32_0 = arith.constant 0 : i32
    %c0_i32_1 = arith.constant 0 : i32
    return %c0_i32, %c0_i32_0 : i32, i32
  }
  func.func @transform_5(%arg0: i32, %arg1: i32) -> (i32, i32) {
    %c0_i32 = arith.constant 0 : i32
    %c0_i32_0 = arith.constant 0 : i32
    return %c0_i32, %arg1 : i32, i32
  }
  func.func @transform_6(%arg0: i32, %arg1: i32) -> (i32, i32) {
    %c0_i32 = arith.constant 0 : i32
    %c0_i32_0 = arith.constant 0 : i32
    return %c0_i32, %arg1 : i32, i32
  }
  func.func @transform_7(%arg0: i32, %arg1: i32) -> (i32, i32) {
    %c0_i32 = arith.constant 0 : i32
    return %arg0, %arg1 : i32, i32
  }
}

module attributes {stable_mosaic.version = 11 : i64} {
  func.func @seq2seq_kernel(%arg0: i32, %arg1: i32, %arg2: memref<8x128xbf16, #tpu.memory_space<vmem>>, %arg3: memref<128x128xbf16, #tpu.memory_space<vmem>>, %arg4: memref<1x128xf32, #tpu.memory_space<vmem>>, %arg5: memref<128x1024xbf16, #tpu.memory_space<vmem>>, %arg6: memref<1x1024xf32, #tpu.memory_space<vmem>>, %arg7: memref<128x128xbf16, #tpu.memory_space<vmem>>, %arg8: memref<1x128xf32, #tpu.memory_space<vmem>>, %arg9: memref<64x128xf32, #tpu.memory_space<vmem>>, %arg10: memref<64x128xbf16, #tpu.memory_space<vmem>>) attributes {dimension_semantics = [#tpu.dimension_semantics<parallel>, #tpu.dimension_semantics<arbitrary>], iteration_bounds = array<i64: 1, 1>, scalar_prefetch = 0 : i64, scratch_operands = 1 : i64, tpu.core_type = #tpu.core_type<tc>, window_params = [{transform_indices = @transform_0, window_bounds = array<i64: 8, 128>}, {pipeline_mode = #tpu.pipeline_mode<synchronous>, transform_indices = @transform_1, window_bounds = array<i64: 128, 128>}, {pipeline_mode = #tpu.pipeline_mode<synchronous>, transform_indices = @transform_2, window_bounds = array<i64: 1, 128>}, {pipeline_mode = #tpu.pipeline_mode<synchronous>, transform_indices = @transform_3, window_bounds = array<i64: 128, 1024>}, {pipeline_mode = #tpu.pipeline_mode<synchronous>, transform_indices = @transform_4, window_bounds = array<i64: 1, 1024>}, {transform_indices = @transform_5, window_bounds = array<i64: 128, 128>}, {transform_indices = @transform_6, window_bounds = array<i64: 1, 128>}, {transform_indices = @transform_7, window_bounds = array<i64: 64, 128>}]} {
    %c0_i32 = arith.constant 0 : i32
    %0 = arith.cmpi eq, %arg1, %c0_i32 : i32
    %1 = arith.extui %0 : i1 to i32
    %c0_i32_0 = arith.constant 0 : i32
    %2 = arith.cmpi ne, %1, %c0_i32_0 : i32
    scf.if %2 {
      %c0_8 = arith.constant 0 : index
      %c0_9 = arith.constant 0 : index
      %10 = vector.load %arg2[%c0_8, %c0_9] : memref<8x128xbf16, #tpu.memory_space<vmem>>, vector<8x128xbf16>
      %c0_10 = arith.constant 0 : index
      %c0_11 = arith.constant 0 : index
      %11 = vector.load %arg3[%c0_10, %c0_11] : memref<128x128xbf16, #tpu.memory_space<vmem>>, vector<128x128xbf16>
      %cst_12 = arith.constant dense<0.000000e+00> : vector<8x128xf32>
      %12 = tpu.matmul %10, %11, %cst_12 {dimension_numbers = #tpu.dot_dimension_numbers<[1], [0], [0], [1], [0, 0, 1, 1], [], []>} : vector<8x128xbf16>, vector<128x128xbf16>, vector<8x128xf32> -> vector<8x128xf32>
      %c0_13 = arith.constant 0 : index
      %c0_14 = arith.constant 0 : index
      %13 = vector.load %arg4[%c0_13, %c0_14] : memref<1x128xf32, #tpu.memory_space<vmem>>, vector<1x128xf32>
      %14 = vector.broadcast %13 : vector<1x128xf32> to vector<8x128xf32>
      %15 = arith.addf %12, %14 : vector<8x128xf32>
      %16 = arith.mulf %15, %15 : vector<8x128xf32>
      %cst_15 = arith.constant dense<0.000000e+00> : vector<8xf32>
      %17 = vector.multi_reduction <add>, %16, %cst_15 [1] : vector<8x128xf32> to vector<8xf32>
      %18 = vector.shape_cast %17 : vector<8xf32> to vector<8x1xf32>
      %19 = math.rsqrt %18 : vector<8x1xf32>
      %20 = vector.broadcast %19 : vector<8x1xf32> to vector<8x128xf32>
      %21 = arith.mulf %15, %20 : vector<8x128xf32>
      %22 = arith.truncf %21 : vector<8x128xf32> to vector<8x128xbf16>
      %c0_16 = arith.constant 0 : index
      %c0_17 = arith.constant 0 : index
      %23 = vector.load %arg5[%c0_16, %c0_17] : memref<128x1024xbf16, #tpu.memory_space<vmem>>, vector<128x1024xbf16>
      %cst_18 = arith.constant dense<0.000000e+00> : vector<8x1024xf32>
      %24 = tpu.matmul %22, %23, %cst_18 {dimension_numbers = #tpu.dot_dimension_numbers<[1], [0], [0], [1], [0, 0, 1, 1], [], []>} : vector<8x128xbf16>, vector<128x1024xbf16>, vector<8x1024xf32> -> vector<8x1024xf32>
      %c0_19 = arith.constant 0 : index
      %c0_20 = arith.constant 0 : index
      %25 = vector.load %arg6[%c0_19, %c0_20] : memref<1x1024xf32, #tpu.memory_space<vmem>>, vector<1x1024xf32>
      %26 = vector.broadcast %25 : vector<1x1024xf32> to vector<8x1024xf32>
      %27 = arith.addf %24, %26 : vector<8x1024xf32>
      %28 = arith.truncf %27 : vector<8x1024xf32> to vector<8x1024xbf16>
      %29 = vector.shape_cast %28 : vector<8x1024xbf16> to vector<64x128xbf16>
      %c0_21 = arith.constant 0 : index
      %c0_22 = arith.constant 0 : index
      %30 = vector.load %arg10[%c0_21, %c0_22] : memref<64x128xbf16, #tpu.memory_space<vmem>>, vector<64x128xbf16>
      tpu.vector_store %arg10[%c0_21, %c0_22], %29 {strides = array<i32>} : memref<64x128xbf16, #tpu.memory_space<vmem>>, vector<64x128xbf16>,
    } else {
    }
    %c0 = arith.constant 0 : index
    %c0_1 = arith.constant 0 : index
    %3 = vector.load %arg10[%c0, %c0_1] : memref<64x128xbf16, #tpu.memory_space<vmem>>, vector<64x128xbf16>
    %c0_2 = arith.constant 0 : index
    %c0_3 = arith.constant 0 : index
    %4 = vector.load %arg7[%c0_2, %c0_3] : memref<128x128xbf16, #tpu.memory_space<vmem>>, vector<128x128xbf16>
    %cst = arith.constant dense<0.000000e+00> : vector<64x128xf32>
    %5 = tpu.matmul %3, %4, %cst {dimension_numbers = #tpu.dot_dimension_numbers<[1], [0], [0], [1], [0, 0, 1, 1], [], []>} : vector<64x128xbf16>, vector<128x128xbf16>, vector<64x128xf32> -> vector<64x128xf32>
    %c0_4 = arith.constant 0 : index
    %c0_5 = arith.constant 0 : index
    %6 = vector.load %arg8[%c0_4, %c0_5] : memref<1x128xf32, #tpu.memory_space<vmem>>, vector<1x128xf32>
    %7 = vector.broadcast %6 : vector<1x128xf32> to vector<64x128xf32>
    %8 = arith.addf %5, %7 : vector<64x128xf32>
    %c0_6 = arith.constant 0 : index
    %c0_7 = arith.constant 0 : index
    %9 = vector.load %arg9[%c0_6, %c0_7] : memref<64x128xf32, #tpu.memory_space<vmem>>, vector<64x128xf32>
    tpu.vector_store %arg9[%c0_6, %c0_7], %8 {strides = array<i32>} : memref<64x128xf32, #tpu.memory_space<vmem>>, vector<64x128xf32>,
    return
  }
  func.func @transform_0(%arg0: i32, %arg1: i32) -> (i32, i32) {
    %c0_i32 = arith.constant 0 : i32
    %c0_i32_0 = arith.constant 0 : i32
    return %arg0, %c0_i32 : i32, i32
  }
  func.func @transform_1(%arg0: i32, %arg1: i32) -> (i32, i32) {
    %c0_i32 = arith.constant 0 : i32
    %c0_i32_0 = arith.constant 0 : i32
    %c0_i32_1 = arith.constant 0 : i32
    return %c0_i32, %c0_i32_0 : i32, i32
  }
  func.func @transform_2(%arg0: i32, %arg1: i32) -> (i32, i32) {
    %c0_i32 = arith.constant 0 : i32
    %c0_i32_0 = arith.constant 0 : i32
    %c0_i32_1 = arith.constant 0 : i32
    return %c0_i32, %c0_i32_0 : i32, i32
  }
  func.func @transform_3(%arg0: i32, %arg1: i32) -> (i32, i32) {
    %c0_i32 = arith.constant 0 : i32
    %c0_i32_0 = arith.constant 0 : i32
    %c0_i32_1 = arith.constant 0 : i32
    return %c0_i32, %c0_i32_0 : i32, i32
  }
  func.func @transform_4(%arg0: i32, %arg1: i32) -> (i32, i32) {
    %c0_i32 = arith.constant 0 : i32
    %c0_i32_0 = arith.constant 0 : i32
    %c0_i32_1 = arith.constant 0 : i32
    return %c0_i32, %c0_i32_0 : i32, i32
  }
  func.func @transform_5(%arg0: i32, %arg1: i32) -> (i32, i32) {
    %c0_i32 = arith.constant 0 : i32
    %c0_i32_0 = arith.constant 0 : i32
    return %c0_i32, %arg1 : i32, i32
  }
  func.func @transform_6(%arg0: i32, %arg1: i32) -> (i32, i32) {
    %c0_i32 = arith.constant 0 : i32
    %c0_i32_0 = arith.constant 0 : i32
    return %c0_i32, %arg1 : i32, i32
  }
  func.func @transform_7(%arg0: i32, %arg1: i32) -> (i32, i32) {
    %c0_i32 = arith.constant 0 : i32
    return %arg0, %arg1 : i32, i32
  }
}

</mosaic_0001>

<llo_original>
// kernel: tpu_custom_call.1
$region0: #{tpu_custom_call.1}
  #allocation0 [shape = 'u32[]', space=smem, size = 0x4, offset = 0x4, fixed_abs, tag = 'smem constant byte address 0x4 - core index']
  #allocation1 [shape = 'u32[72,128]{1,0:T(1,128)}', space=vmem, size = 0x9000, scoped, tag = 'internal scratch']
  #allocation2 [shape = 'bf16[64,128]{1,0:T(8,128)(2,1)}', space=vmem, size = 0x4000, scoped, tag = 'scratch operand']
  %s0 = inlined_call_operand.hbm [shape: bf16[8,128], index: 0, kind: input, shape index: {}]
  %s1 = inlined_call_operand.hbm [shape: bf16[128,128], index: 1, kind: input, shape index: {}]
  %s2 = inlined_call_operand.vmem [shape: f32[1,128], index: 2, kind: input, shape index: {}]
  %s3 = inlined_call_operand.hbm [shape: bf16[128,1024], index: 3, kind: input, shape index: {}]
  %s4 = inlined_call_operand.hbm [shape: f32[1,1024], index: 4, kind: input, shape index: {}]
  %s5 = inlined_call_operand.hbm [shape: bf16[128,128], index: 5, kind: input, shape index: {}]
  %s6 = inlined_call_operand.vmem [shape: f32[1,128], index: 6, kind: input, shape index: {}]
  %s7 = inlined_call_operand.hbm [shape: f32[64,128], index: 7, kind: output, shape index: {}]
  %s8 = sld [smem:[#allocation0]]
  $region62: #{tpu_custom_call.1} parent=0
    _
  %s10 = ssub.s32 1, %s8
  %s11 = scalar_select 0, %s10, %s8
  $region1: #{tpu_custom_call.1} parent=0
    #allocation3 [shape = 'u8[2048]{0}', space=vmem, size = 0x800, scoped, tag = 'input window, operand 0, single buffered']
    #allocation4 [shape = 's32[1]{0}', space=sflag, size = 0x4, scoped, tag = 'scoped memory for tpu_custom_call.1']
    #allocation5 [shape = 's32[1]{0}', space=sflag, size = 0x4, scoped, tag = 'scoped memory for tpu_custom_call.1']
    #allocation6 [shape = 'u8[32768]{0}', space=vmem, size = 0x8000, scoped, tag = 'input window, operand 1, single buffered']
    #allocation7 [shape = 's32[1]{0}', space=sflag, size = 0x4, scoped, tag = 'scoped memory for tpu_custom_call.1']
    #allocation8 [shape = 'u8[262144]{0}', space=vmem, size = 0x40000, scoped, tag = 'input window, operand 3, single buffered']
    #allocation9 [shape = 'u8[4096]{0}', space=vmem, size = 0x1000, scoped, tag = 'input window, operand 4, single buffered']
    #allocation10 [shape = 's32[1]{0}', space=sflag, size = 0x4, scoped, tag = 'scoped memory for tpu_custom_call.1']
    #allocation11 [shape = 'u8[32768]{0}', space=vmem, size = 0x8000, scoped, tag = 'input window, operand 5, single buffered']
    #allocation12 [shape = 'u8[32768]{0}', space=vmem, size = 0x8000, scoped, tag = 'output window, operand 0, single buffered']
    %12 = vsyncpa [#allocation4], 0
    %13 = vsyncpa [#allocation7], 0
    %14 = vsyncpa [#allocation10], 0
    %15 = vsyncpa [#allocation5], 0
    // Predicated region
    $region2: #{tpu_custom_call.1} parent=1 // pred_check
      _
    $region3: #{tpu_custom_call.1} parent=1 // pred_check_branch
      %17 = sbr.rel (0) target = $region5
    $region4: #{tpu_custom_call.1} parent=1 // pred_region
      %19 = vsyncadd [#allocation4], 0
      %s21 = sshll.u32 %s0, 4
      %s22 = int_to_ptr.hbm [resolvable:$true] %s21
      %s23 = sshll.u32 [#allocation3], 4
      %s24 = int_to_ptr.vmem [resolvable:$true] %s23
      %26 = dma.hbm_to_vmem [thread:$0]  %s22, 64, %s24, [#allocation4]
    $region5: #{tpu_custom_call.1} parent=1 // pred_fallthru
      _
    // Predicated region
    $region6: #{tpu_custom_call.1} parent=1 // pred_check
      _
    $region7: #{tpu_custom_call.1} parent=1 // pred_check_branch
      %28 = sbr.rel (0) target = $region9
    $region8: #{tpu_custom_call.1} parent=1 // pred_region
      %30 = vsyncadd [#allocation7], 0
      %s31 = sshll.u32 %s1, 4
      %s32 = int_to_ptr.hbm [resolvable:$true] %s31
      %s33 = sshll.u32 [#allocation6], 4
      %s34 = int_to_ptr.vmem [resolvable:$true] %s33
      %39 = dma.hbm_to_vmem [thread:$0]  %s32, 1024, %s34, [#allocation7], 64, 64, 4
    $region9: #{tpu_custom_call.1} parent=1 // pred_fallthru
      _
    // Predicated region
    $region10: #{tpu_custom_call.1} parent=1 // pred_check
      _
    $region11: #{tpu_custom_call.1} parent=1 // pred_check_branch
      %41 = sbr.rel (0) target = $region13
    $region12: #{tpu_custom_call.1} parent=1 // pred_region
      _
    $region13: #{tpu_custom_call.1} parent=1 // pred_fallthru
      _
    // Predicated region
    $region14: #{tpu_custom_call.1} parent=1 // pred_check
      _
    $region15: #{tpu_custom_call.1} parent=1 // pred_check_branch
      %43 = sbr.rel (0) target = $region17
    $region16: #{tpu_custom_call.1} parent=1 // pred_region
      %45 = vsyncadd [#allocation7], 0
      %s46 = sshll.u32 %s3, 4
      %s47 = int_to_ptr.hbm [resolvable:$true] %s46
      %s48 = sshll.u32 [#allocation8], 4
      %s49 = int_to_ptr.vmem [resolvable:$true] %s48
      %54 = dma.hbm_to_vmem [thread:$0]  %s47, 8192, %s49, [#allocation7], 512, 512, 32
    $region17: #{tpu_custom_call.1} parent=1 // pred_fallthru
      _
    // Predicated region
    $region18: #{tpu_custom_call.1} parent=1 // pred_check
      _
    $region19: #{tpu_custom_call.1} parent=1 // pred_check_branch
      %56 = sbr.rel (0) target = $region21
    $region20: #{tpu_custom_call.1} parent=1 // pred_region
      %58 = vsyncadd [#allocation10], 0
      %s60 = sshll.u32 %s4, 4
      %s61 = int_to_ptr.hbm [resolvable:$true] %s60
      %s62 = sshll.u32 [#allocation9], 4
      %s63 = int_to_ptr.vmem [resolvable:$true] %s62
      %65 = dma.hbm_to_vmem [thread:$0]  %s61, 128, %s63, [#allocation10]
    $region21: #{tpu_custom_call.1} parent=1 // pred_fallthru
      _
    // Predicated region
    $region22: #{tpu_custom_call.1} parent=1 // pred_check
      _
    $region23: #{tpu_custom_call.1} parent=1 // pred_check_branch
      %67 = sbr.rel (0) target = $region25
    $region24: #{tpu_custom_call.1} parent=1 // pred_region
      %69 = vsyncadd [#allocation10], 0
      %s70 = sshll.u32 %s5, 4
      %s71 = int_to_ptr.hbm [resolvable:$true] %s70
      %s72 = sshll.u32 [#allocation11], 4
      %s73 = int_to_ptr.vmem [resolvable:$true] %s72
      %78 = dma.hbm_to_vmem [thread:$0]  %s71, 1024, %s73, [#allocation10], 64, 64, 4
    $region25: #{tpu_custom_call.1} parent=1 // pred_fallthru
      _
    // Predicated region
    $region26: #{tpu_custom_call.1} parent=1 // pred_check
      _
    $region27: #{tpu_custom_call.1} parent=1 // pred_check_branch
      %80 = sbr.rel (0) target = $region29
    $region28: #{tpu_custom_call.1} parent=1 // pred_region
      _
    $region29: #{tpu_custom_call.1} parent=1 // pred_fallthru
      _
    // Predicated region
    $region30: #{tpu_custom_call.1} parent=1 // pred_check
      _
    $region31: #{tpu_custom_call.1} parent=1 // pred_check_branch
      %82 = sbr.rel (0) target = $region33
    $region32: #{tpu_custom_call.1} parent=1 // pred_region
      %84 = dma.done [#allocation4], 64
    $region33: #{tpu_custom_call.1} parent=1 // pred_fallthru
      _
    // Predicated region
    $region34: #{tpu_custom_call.1} parent=1 // pred_check
      _
    $region35: #{tpu_custom_call.1} parent=1 // pred_check_branch
      %86 = sbr.rel (0) target = $region37
    $region36: #{tpu_custom_call.1} parent=1 // pred_region
      %88 = dma.done [#allocation7], 1024
    $region37: #{tpu_custom_call.1} parent=1 // pred_fallthru
      _
    // Predicated region
    $region38: #{tpu_custom_call.1} parent=1 // pred_check
      _
    $region39: #{tpu_custom_call.1} parent=1 // pred_check_branch
      %90 = sbr.rel (0) target = $region41
    $region40: #{tpu_custom_call.1} parent=1 // pred_region
      %92 = dma.done [#allocation7], 8192
    $region41: #{tpu_custom_call.1} parent=1 // pred_fallthru
      _
    // Predicated region
    $region42: #{tpu_custom_call.1} parent=1 // pred_check
      _
    $region43: #{tpu_custom_call.1} parent=1 // pred_check_branch
      %94 = sbr.rel (0) target = $region45
    $region44: #{tpu_custom_call.1} parent=1 // pred_region
      %96 = dma.done [#allocation10], 128
    $region45: #{tpu_custom_call.1} parent=1 // pred_fallthru
      _
    // Predicated region
    $region46: #{tpu_custom_call.1} parent=1 // pred_check
      _
    $region47: #{tpu_custom_call.1} parent=1 // pred_check_branch
      %98 = sbr.rel (0) target = $region49
    $region48: #{tpu_custom_call.1} parent=1 // pred_region
      %100 = dma.done [#allocation10], 1024
    $region49: #{tpu_custom_call.1} parent=1 // pred_fallthru
      _
    %p101 = scmp.eq.s32.totalorder 0, 0
    // Predicated region
    $region50: #{tpu_custom_call.1} parent=1 // pred_check
      %p102 = pneg %p101
    $region51: #{tpu_custom_call.1} parent=1 // pred_check_branch
      %104 = sbr.rel (%p102) target = $region53
    $region52: #{tpu_custom_call.1} parent=1 // pred_region
      %v105 = vld [vmem:[#allocation3] sm:$0xf]
      %v106 = vld [vmem:[#allocation6] sm:$0xf]
      %v107 = vld [vmem:[#allocation6 + $0x4] sm:$0xf]
      %v108 = vld [vmem:[#allocation6 + $0x8] sm:$0xf]
      %v109 = vld [vmem:[#allocation6 + $0xc] sm:$0xf]
      %v110 = vld [vmem:[#allocation6 + $0x10] sm:$0xf]
      %v111 = vld [vmem:[#allocation6 + $0x14] sm:$0xf]
      %v112 = vld [vmem:[#allocation6 + $0x18] sm:$0xf]
      %v113 = vld [vmem:[#allocation6 + $0x1c] sm:$0xf]
      %v114 = vld [vmem:[#allocation6 + $0x20] sm:$0xf]
      %v115 = vld [vmem:[#allocation6 + $0x24] sm:$0xf]
      %v116 = vld [vmem:[#allocation6 + $0x28] sm:$0xf]
      %v117 = vld [vmem:[#allocation6 + $0x2c] sm:$0xf]
      %v118 = vld [vmem:[#allocation6 + $0x30] sm:$0xf]
      %v119 = vld [vmem:[#allocation6 + $0x34] sm:$0xf]
      %v120 = vld [vmem:[#allocation6 + $0x38] sm:$0xf]
      %v121 = vld [vmem:[#allocation6 + $0x3c] sm:$0xf]
      %v122 = vld [vmem:[%s2] sm:$0x1]
      %v124 = vperm.slane %v122, 0
      %v142 = vunpack.c.l.b16 %v106
      %v143 = vunpack.c.l.b16 %v107
      %v144 = vunpack.c.l.b16 %v108
      %v145 = vunpack.c.l.b16 %v109
      %v146 = vunpack.c.l.b16 %v110
      %v147 = vunpack.c.l.b16 %v111
      %v148 = vunpack.c.l.b16 %v112
      %v149 = vunpack.c.l.b16 %v113
      %v150 = vunpack.c.l.b16 %v114
      %v151 = vunpack.c.l.b16 %v115
      %v152 = vunpack.c.l.b16 %v116
      %v153 = vunpack.c.l.b16 %v117
      %v154 = vunpack.c.l.b16 %v118
      %v155 = vunpack.c.l.b16 %v119
      %v156 = vunpack.c.l.b16 %v120
      %v157 = vunpack.c.l.b16 %v121
      %v158 = vpack.c.b16 %v143, %v142
      %v159 = vpack.c.b16 %v145, %v144
      %v160 = vpack.c.b16 %v147, %v146
      %v161 = vpack.c.b16 %v149, %v148
      %v162 = vpack.c.b16 %v151, %v150
      %v163 = vpack.c.b16 %v153, %v152
      %v164 = vpack.c.b16 %v155, %v154
      %v165 = vpack.c.b16 %v157, %v156
      %174 = vmatpush.bf16.msra.mxu0 %v165
      %175 = vmatpush.bf16.msra.mxu0 %v164
      %176 = vmatpush.bf16.msra.mxu0 %v163
      %177 = vmatpush.bf16.msra.mxu0 %v162
      %178 = vmatpush.bf16.msra.mxu0 %v161
      %179 = vmatpush.bf16.msra.mxu0 %v160
      %180 = vmatpush.bf16.msra.mxu0 %v159
      %181 = vmatpush.bf16.msra.mxu0 %v158
      %182 = vmatmul.bf16.gmra.mxu0 %v105
      %v183 = vpop.f32.mrf.mxu0
      %v184 = vadd.f32 %v124, %v183
      %v185 = vpop.f32.mrf.mxu0
      %186 = vdwg.mxu0
      %v187 = vmul.f32 %v184, %v184
      %188 = vadd.xlane.f32.xlu0 %v187
      %v189 = vpop.xlane.xlu0 %188
      %v190 = vrsqrt.pop %v189
      %v191 = vmul.f32 %v190, %v189
      %v192 = vmul.f32 %v191, %v190
      %v193 = vmul.f32 0.5, %v192
      %v194 = vsub.f32 1.5, %v193
      %v195 = vmul.f32 %v190, %v194
      %vm196 = vweird.f32 %v189
      %vm197 = vweird.f32 %v190
      %vm198 = vmor %vm196, %vm197
      %v199 = vsel %vm198, %v190, %v195
      %v200 = vmul.f32 %v184, %v199
      %v201 = vpack.c.bf16 %v200, %v200
      %v202 = vld [vmem:[#allocation8] sm:$0xff]
      %v203 = vld [vmem:[#allocation8 + $0x8] sm:$0xff]
      %v204 = vld [vmem:[#allocation8 + $0x10] sm:$0xff]
      %v205 = vld [vmem:[#allocation8 + $0x18] sm:$0xff]
      %v206 = vld [vmem:[#allocation8 + $0x20] sm:$0xff]
      %v207 = vld [vmem:[#allocation8 + $0x28] sm:$0xff]
      %v208 = vld [vmem:[#allocation8 + $0x30] sm:$0xff]
      %v209 = vld [vmem:[#allocation8 + $0x38] sm:$0xff]
      %v210 = vld [vmem:[#allocation8 + $0x40] sm:$0xff]
      %v211 = vld [vmem:[#allocation8 + $0x48] sm:$0xff]
      %v212 = vld [vmem:[#allocation8 + $0x50] sm:$0xff]
      %v213 = vld [vmem:[#allocation8 + $0x58] sm:$0xff]
      %v214 = vld [vmem:[#allocation8 + $0x60] sm:$0xff]
      %v215 = vld [vmem:[#allocation8 + $0x68] sm:$0xff]
      %v216 = vld [vmem:[#allocation8 + $0x70] sm:$0xff]
      %v217 = vld [vmem:[#allocation8 + $0x78] sm:$0xff]
      %v218 = vld [vmem:[#allocation8 + $0x80] sm:$0xff]
      %v219 = vld [vmem:[#allocation8 + $0x88] sm:$0xff]
      %v220 = vld [vmem:[#allocation8 + $0x90] sm:$0xff]
      %v221 = vld [vmem:[#allocation8 + $0x98] sm:$0xff]
      %v222 = vld [vmem:[#allocation8 + $0xa0] sm:$0xff]
      %v223 = vld [vmem:[#allocation8 + $0xa8] sm:$0xff]
      %v224 = vld [vmem:[#allocation8 + $0xb0] sm:$0xff]
      %v225 = vld [vmem:[#allocation8 + $0xb8] sm:$0xff]
      %v226 = vld [vmem:[#allocation8 + $0xc0] sm:$0xff]
      %v227 = vld [vmem:[#allocation8 + $0xc8] sm:$0xff]
      %v228 = vld [vmem:[#allocation8 + $0xd0] sm:$0xff]
      %v229 = vld [vmem:[#allocation8 + $0xd8] sm:$0xff]
      %v230 = vld [vmem:[#allocation8 + $0xe0] sm:$0xff]
      %v231 = vld [vmem:[#allocation8 + $0xe8] sm:$0xff]
      %v232 = vld [vmem:[#allocation8 + $0xf0] sm:$0xff]
      %v233 = vld [vmem:[#allocation8 + $0xf8] sm:$0xff]
      %v234 = vld [vmem:[#allocation8 + $0x100] sm:$0xff]
      %v235 = vld [vmem:[#allocation8 + $0x108] sm:$0xff]
      %v236 = vld [vmem:[#allocation8 + $0x110] sm:$0xff]
      %v237 = vld [vmem:[#allocation8 + $0x118] sm:$0xff]
      %v238 = vld [vmem:[#allocation8 + $0x120] sm:$0xff]
      %v239 = vld [vmem:[#allocation8 + $0x128] sm:$0xff]
      %v240 = vld [vmem:[#allocation8 + $0x130] sm:$0xff]
      %v241 = vld [vmem:[#allocation8 + $0x138] sm:$0xff]
      %v242 = vld [vmem:[#allocation8 + $0x140] sm:$0xff]
      %v243 = vld [vmem:[#allocation8 + $0x148] sm:$0xff]
      %v244 = vld [vmem:[#allocation8 + $0x150] sm:$0xff]
      %v245 = vld [vmem:[#allocation8 + $0x158] sm:$0xff]
      %v246 = vld [vmem:[#allocation8 + $0x160] sm:$0xff]
      %v247 = vld [vmem:[#allocation8 + $0x168] sm:$0xff]
      %v248 = vld [vmem:[#allocation8 + $0x170] sm:$0xff]
      %v249 = vld [vmem:[#allocation8 + $0x178] sm:$0xff]
      %v250 = vld [vmem:[#allocation8 + $0x180] sm:$0xff]
      %v251 = vld [vmem:[#allocation8 + $0x188] sm:$0xff]
      %v252 = vld [vmem:[#allocation8 + $0x190] sm:$0xff]
      %v253 = vld [vmem:[#allocation8 + $0x198] sm:$0xff]
      %v254 = vld [vmem:[#allocation8 + $0x1a0] sm:$0xff]
      %v255 = vld [vmem:[#allocation8 + $0x1a8] sm:$0xff]
      %v256 = vld [vmem:[#allocation8 + $0x1b0] sm:$0xff]
      %v257 = vld [vmem:[#allocation8 + $0x1b8] sm:$0xff]
      %v258 = vld [vmem:[#allocation8 + $0x1c0] sm:$0xff]
      %v259 = vld [vmem:[#allocation8 + $0x1c8] sm:$0xff]
      %v260 = vld [vmem:[#allocation8 + $0x1d0] sm:$0xff]
      %v261 = vld [vmem:[#allocation8 + $0x1d8] sm:$0xff]
      %v262 = vld [vmem:[#allocation8 + $0x1e0] sm:$0xff]
      %v263 = vld [vmem:[#allocation8 + $0x1e8] sm:$0xff]
      %v264 = vld [vmem:[#allocation8 + $0x1f0] sm:$0xff]
      %v265 = vld [vmem:[#allocation8 + $0x1f8] sm:$0xff]
      %v266 = vld [vmem:[#allocation9] sm:$0xff]
      %v268 = vperm.slane %v266, 0
      %v269 = vperm.slane %v266, 1
      %v270 = vperm.slane %v266, 2
      %v271 = vperm.slane %v266, 3
      %v272 = vperm.slane %v266, 4
      %v273 = vperm.slane %v266, 5
      %v274 = vperm.slane %v266, 6
      %v275 = vperm.slane %v266, 7
      %v348 = vunpack.c.l.b16 %v202
      %v349 = vunpack.c.h.b16 %v202
      %v350 = vunpack.c.l.b16 %v203
      %v351 = vunpack.c.h.b16 %v203
      %v352 = vunpack.c.l.b16 %v204
      %v353 = vunpack.c.h.b16 %v204
      %v354 = vunpack.c.l.b16 %v205
      %v355 = vunpack.c.h.b16 %v205
      %v356 = vunpack.c.l.b16 %v206
      %v357 = vunpack.c.h.b16 %v206
      %v358 = vunpack.c.l.b16 %v207
      %v359 = vunpack.c.h.b16 %v207
      %v360 = vunpack.c.l.b16 %v208
      %v361 = vunpack.c.h.b16 %v208
      %v362 = vunpack.c.l.b16 %v209
      %v363 = vunpack.c.h.b16 %v209
      %v364 = vunpack.c.l.b16 %v210
      %v365 = vunpack.c.h.b16 %v210
      %v366 = vunpack.c.l.b16 %v211
      %v367 = vunpack.c.h.b16 %v211
      %v368 = vunpack.c.l.b16 %v212
      %v369 = vunpack.c.h.b16 %v212
      %v370 = vunpack.c.l.b16 %v213
      %v371 = vunpack.c.h.b16 %v213
      %v372 = vunpack.c.l.b16 %v214
      %v373 = vunpack.c.h.b16 %v214
      %v374 = vunpack.c.l.b16 %v215
      %v375 = vunpack.c.h.b16 %v215
      %v376 = vunpack.c.l.b16 %v216
      %v377 = vunpack.c.h.b16 %v216
      %v378 = vunpack.c.l.b16 %v217
      %v379 = vunpack.c.h.b16 %v217
      %v380 = vunpack.c.l.b16 %v218
      %v381 = vunpack.c.h.b16 %v218
      %v382 = vunpack.c.l.b16 %v219
      %v383 = vunpack.c.h.b16 %v219
      %v384 = vunpack.c.l.b16 %v220
      %v385 = vunpack.c.h.b16 %v220
      %v386 = vunpack.c.l.b16 %v221
      %v387 = vunpack.c.h.b16 %v221
      %v388 = vunpack.c.l.b16 %v222
      %v389 = vunpack.c.h.b16 %v222
      %v390 = vunpack.c.l.b16 %v223
      %v391 = vunpack.c.h.b16 %v223
      %v392 = vunpack.c.l.b16 %v224
      %v393 = vunpack.c.h.b16 %v224
      %v394 = vunpack.c.l.b16 %v225
      %v395 = vunpack.c.h.b16 %v225
      %v396 = vunpack.c.l.b16 %v226
      %v397 = vunpack.c.h.b16 %v226
      %v398 = vunpack.c.l.b16 %v227
      %v399 = vunpack.c.h.b16 %v227
      %v400 = vunpack.c.l.b16 %v228
      %v401 = vunpack.c.h.b16 %v228
      %v402 = vunpack.c.l.b16 %v229
      %v403 = vunpack.c.h.b16 %v229
      %v404 = vunpack.c.l.b16 %v230
      %v405 = vunpack.c.h.b16 %v230
      %v406 = vunpack.c.l.b16 %v231
      %v407 = vunpack.c.h.b16 %v231
      %v408 = vunpack.c.l.b16 %v232
      %v409 = vunpack.c.h.b16 %v232
      %v410 = vunpack.c.l.b16 %v233
      %v411 = vunpack.c.h.b16 %v233
      %v412 = vunpack.c.l.b16 %v234
      %v413 = vunpack.c.h.b16 %v234
      %v414 = vunpack.c.l.b16 %v235
      %v415 = vunpack.c.h.b16 %v235
      %v416 = vunpack.c.l.b16 %v236
      %v417 = vunpack.c.h.b16 %v236
      %v418 = vunpack.c.l.b16 %v237
      %v419 = vunpack.c.h.b16 %v237
      %v420 = vunpack.c.l.b16 %v238
      %v421 = vunpack.c.h.b16 %v238
      %v422 = vunpack.c.l.b16 %v239
      %v423 = vunpack.c.h.b16 %v239
      %v424 = vunpack.c.l.b16 %v240
      %v425 = vunpack.c.h.b16 %v240
      %v426 = vunpack.c.l.b16 %v241
      %v427 = vunpack.c.h.b16 %v241
      %v428 = vunpack.c.l.b16 %v242
      %v429 = vunpack.c.h.b16 %v242
      %v430 = vunpack.c.l.b16 %v243
      %v431 = vunpack.c.h.b16 %v243
      %v432 = vunpack.c.l.b16 %v244
      %v433 = vunpack.c.h.b16 %v244
      %v434 = vunpack.c.l.b16 %v245
      %v435 = vunpack.c.h.b16 %v245
      %v436 = vunpack.c.l.b16 %v246
      %v437 = vunpack.c.h.b16 %v246
      %v438 = vunpack.c.l.b16 %v247
      %v439 = vunpack.c.h.b16 %v247
      %v440 = vunpack.c.l.b16 %v248
      %v441 = vunpack.c.h.b16 %v248
      %v442 = vunpack.c.l.b16 %v249
      %v443 = vunpack.c.h.b16 %v249
      %v444 = vunpack.c.l.b16 %v250
      %v445 = vunpack.c.h.b16 %v250
      %v446 = vunpack.c.l.b16 %v251
      %v447 = vunpack.c.h.b16 %v251
      %v448 = vunpack.c.l.b16 %v252
      %v449 = vunpack.c.h.b16 %v252
      %v450 = vunpack.c.l.b16 %v253
      %v451 = vunpack.c.h.b16 %v253
      %v452 = vunpack.c.l.b16 %v254
      %v453 = vunpack.c.h.b16 %v254
      %v454 = vunpack.c.l.b16 %v255
      %v455 = vunpack.c.h.b16 %v255
      %v456 = vunpack.c.l.b16 %v256
      %v457 = vunpack.c.h.b16 %v256
      %v458 = vunpack.c.l.b16 %v257
      %v459 = vunpack.c.h.b16 %v257
      %v460 = vunpack.c.l.b16 %v258
      %v461 = vunpack.c.h.b16 %v258
      %v462 = vunpack.c.l.b16 %v259
      %v463 = vunpack.c.h.b16 %v259
      %v464 = vunpack.c.l.b16 %v260
      %v465 = vunpack.c.h.b16 %v260
      %v466 = vunpack.c.l.b16 %v261
      %v467 = vunpack.c.h.b16 %v261
      %v468 = vunpack.c.l.b16 %v262
      %v469 = vunpack.c.h.b16 %v262
      %v470 = vunpack.c.l.b16 %v263
      %v471 = vunpack.c.h.b16 %v263
      %v472 = vunpack.c.l.b16 %v264
      %v473 = vunpack.c.h.b16 %v264
      %v474 = vunpack.c.l.b16 %v265
      %v475 = vunpack.c.h.b16 %v265
      %v476 = vpack.c.b16 %v356, %v348
      %v477 = vpack.c.b16 %v357, %v349
      %v478 = vpack.c.b16 %v358, %v350
      %v479 = vpack.c.b16 %v359, %v351
      %v480 = vpack.c.b16 %v360, %v352
      %v481 = vpack.c.b16 %v361, %v353
      %v482 = vpack.c.b16 %v362, %v354
      %v483 = vpack.c.b16 %v363, %v355
      %v484 = vpack.c.b16 %v372, %v364
      %v485 = vpack.c.b16 %v373, %v365
      %v486 = vpack.c.b16 %v374, %v366
      %v487 = vpack.c.b16 %v375, %v367
      %v488 = vpack.c.b16 %v376, %v368
      %v489 = vpack.c.b16 %v377, %v369
      %v490 = vpack.c.b16 %v378, %v370
      %v491 = vpack.c.b16 %v379, %v371
      %v492 = vpack.c.b16 %v388, %v380
      %v493 = vpack.c.b16 %v389, %v381
      %v494 = vpack.c.b16 %v390, %v382
      %v495 = vpack.c.b16 %v391, %v383
      %v496 = vpack.c.b16 %v392, %v384
      %v497 = vpack.c.b16 %v393, %v385
      %v498 = vpack.c.b16 %v394, %v386
      %v499 = vpack.c.b16 %v395, %v387
      %v500 = vpack.c.b16 %v404, %v396
      %v501 = vpack.c.b16 %v405, %v397
      %v502 = vpack.c.b16 %v406, %v398
      %v503 = vpack.c.b16 %v407, %v399
      %v504 = vpack.c.b16 %v408, %v400
      %v505 = vpack.c.b16 %v409, %v401
      %v506 = vpack.c.b16 %v410, %v402
      %v507 = vpack.c.b16 %v411, %v403
      %v508 = vpack.c.b16 %v420, %v412
      %v509 = vpack.c.b16 %v421, %v413
      %v510 = vpack.c.b16 %v422, %v414
      %v511 = vpack.c.b16 %v423, %v415
      %v512 = vpack.c.b16 %v424, %v416
      %v513 = vpack.c.b16 %v425, %v417
      %v514 = vpack.c.b16 %v426, %v418
      %v515 = vpack.c.b16 %v427, %v419
      %v516 = vpack.c.b16 %v436, %v428
      %v517 = vpack.c.b16 %v437, %v429
      %v518 = vpack.c.b16 %v438, %v430
      %v519 = vpack.c.b16 %v439, %v431
      %v520 = vpack.c.b16 %v440, %v432
      %v521 = vpack.c.b16 %v441, %v433
      %v522 = vpack.c.b16 %v442, %v434
      %v523 = vpack.c.b16 %v443, %v435
      %v524 = vpack.c.b16 %v452, %v444
      %v525 = vpack.c.b16 %v453, %v445
      %v526 = vpack.c.b16 %v454, %v446
      %v527 = vpack.c.b16 %v455, %v447
      %v528 = vpack.c.b16 %v456, %v448
      %v529 = vpack.c.b16 %v457, %v449
      %v530 = vpack.c.b16 %v458, %v450
      %v531 = vpack.c.b16 %v459, %v451
      %v532 = vpack.c.b16 %v468, %v460
      %v533 = vpack.c.b16 %v469, %v461
      %v534 = vpack.c.b16 %v470, %v462
      %v535 = vpack.c.b16 %v471, %v463
      %v536 = vpack.c.b16 %v472, %v464
      %v537 = vpack.c.b16 %v473, %v465
      %v538 = vpack.c.b16 %v474, %v466
      %v539 = vpack.c.b16 %v475, %v467
      %604 = vmatpush.bf16.msra.mxu0 %v532
      %605 = vmatpush.bf16.msra.mxu0 %v524
      %606 = vmatpush.bf16.msra.mxu0 %v516
      %607 = vmatpush.bf16.msra.mxu0 %v508
      %608 = vmatpush.bf16.msra.mxu0 %v500
      %609 = vmatpush.bf16.msra.mxu0 %v492
      %610 = vmatpush.bf16.msra.mxu0 %v484
      %611 = vmatpush.bf16.msra.mxu0 %v476
      %612 = vmatmul.bf16.gmra.mxu0 %v201
      %v613 = vpop.f32.mrf.mxu0
      %v614 = vadd.f32 %v268, %v613
      %v615 = vpop.f32.mrf.mxu0
      %616 = vdwg.mxu0
      %617 = vmatpush.bf16.msra.mxu0 %v533
      %618 = vmatpush.bf16.msra.mxu0 %v525
      %619 = vmatpush.bf16.msra.mxu0 %v517
      %620 = vmatpush.bf16.msra.mxu0 %v509
      %621 = vmatpush.bf16.msra.mxu0 %v501
      %622 = vmatpush.bf16.msra.mxu0 %v493
      %623 = vmatpush.bf16.msra.mxu0 %v485
      %624 = vmatpush.bf16.msra.mxu0 %v477
      %625 = vmatmul.bf16.gmra.mxu0 %v201
      %v626 = vpop.f32.mrf.mxu0
      %v627 = vadd.f32 %v269, %v626
      %v628 = vpop.f32.mrf.mxu0
      %629 = vdwg.mxu0
      %630 = vmatpush.bf16.msra.mxu0 %v534
      %631 = vmatpush.bf16.msra.mxu0 %v526
      %632 = vmatpush.bf16.msra.mxu0 %v518
      %633 = vmatpush.bf16.msra.mxu0 %v510
      %634 = vmatpush.bf16.msra.mxu0 %v502
      %635 = vmatpush.bf16.msra.mxu0 %v494
      %636 = vmatpush.bf16.msra.mxu0 %v486
      %637 = vmatpush.bf16.msra.mxu0 %v478
      %638 = vmatmul.bf16.gmra.mxu0 %v201
      %v639 = vpop.f32.mrf.mxu0
      %v640 = vadd.f32 %v270, %v639
      %v641 = vpop.f32.mrf.mxu0
      %642 = vdwg.mxu0
      %643 = vmatpush.bf16.msra.mxu0 %v535
      %644 = vmatpush.bf16.msra.mxu0 %v527
      %645 = vmatpush.bf16.msra.mxu0 %v519
      %646 = vmatpush.bf16.msra.mxu0 %v511
      %647 = vmatpush.bf16.msra.mxu0 %v503
      %648 = vmatpush.bf16.msra.mxu0 %v495
      %649 = vmatpush.bf16.msra.mxu0 %v487
      %650 = vmatpush.bf16.msra.mxu0 %v479
      %651 = vmatmul.bf16.gmra.mxu0 %v201
      %v652 = vpop.f32.mrf.mxu0
      %v653 = vadd.f32 %v271, %v652
      %v654 = vpop.f32.mrf.mxu0
      %655 = vdwg.mxu0
      %656 = vmatpush.bf16.msra.mxu0 %v536
      %657 = vmatpush.bf16.msra.mxu0 %v528
      %658 = vmatpush.bf16.msra.mxu0 %v520
      %659 = vmatpush.bf16.msra.mxu0 %v512
      %660 = vmatpush.bf16.msra.mxu0 %v504
      %661 = vmatpush.bf16.msra.mxu0 %v496
      %662 = vmatpush.bf16.msra.mxu0 %v488
      %663 = vmatpush.bf16.msra.mxu0 %v480
      %664 = vmatmul.bf16.gmra.mxu0 %v201
      %v665 = vpop.f32.mrf.mxu0
      %v666 = vadd.f32 %v272, %v665
      %v667 = vpop.f32.mrf.mxu0
      %668 = vdwg.mxu0
      %669 = vmatpush.bf16.msra.mxu0 %v537
      %670 = vmatpush.bf16.msra.mxu0 %v529
      %671 = vmatpush.bf16.msra.mxu0 %v521
      %672 = vmatpush.bf16.msra.mxu0 %v513
      %673 = vmatpush.bf16.msra.mxu0 %v505
      %674 = vmatpush.bf16.msra.mxu0 %v497
      %675 = vmatpush.bf16.msra.mxu0 %v489
      %676 = vmatpush.bf16.msra.mxu0 %v481
      %677 = vmatmul.bf16.gmra.mxu0 %v201
      %v678 = vpop.f32.mrf.mxu0
      %v679 = vadd.f32 %v273, %v678
      %v680 = vpop.f32.mrf.mxu0
      %681 = vdwg.mxu0
      %682 = vmatpush.bf16.msra.mxu0 %v538
      %683 = vmatpush.bf16.msra.mxu0 %v530
      %684 = vmatpush.bf16.msra.mxu0 %v522
      %685 = vmatpush.bf16.msra.mxu0 %v514
      %686 = vmatpush.bf16.msra.mxu0 %v506
      %687 = vmatpush.bf16.msra.mxu0 %v498
      %688 = vmatpush.bf16.msra.mxu0 %v490
      %689 = vmatpush.bf16.msra.mxu0 %v482
      %690 = vmatmul.bf16.gmra.mxu0 %v201
      %v691 = vpop.f32.mrf.mxu0
      %v692 = vadd.f32 %v274, %v691
      %v693 = vpop.f32.mrf.mxu0
      %694 = vdwg.mxu0
      %695 = vmatpush.bf16.msra.mxu0 %v539
      %696 = vmatpush.bf16.msra.mxu0 %v531
      %697 = vmatpush.bf16.msra.mxu0 %v523
      %698 = vmatpush.bf16.msra.mxu0 %v515
      %699 = vmatpush.bf16.msra.mxu0 %v507
      %700 = vmatpush.bf16.msra.mxu0 %v499
      %701 = vmatpush.bf16.msra.mxu0 %v491
      %702 = vmatpush.bf16.msra.mxu0 %v483
      %703 = vmatmul.bf16.gmra.mxu0 %v201
      %v704 = vpop.f32.mrf.mxu0
      %v705 = vadd.f32 %v275, %v704
      %v706 = vpop.f32.mrf.mxu0
      %707 = vdwg.mxu0
      %v708 = vpack.c.bf16 %v627, %v614
      %v709 = vpack.c.bf16 %v653, %v640
      %v710 = vpack.c.bf16 %v679, %v666
      %v711 = vpack.c.bf16 %v705, %v692
      %v716 = vrot.slane %v708, 3
      %v717 = vrot.slane %v709, 6
      %v718 = vrot.slane %v709, 1
      %v719 = vrot.slane %v710, 4
      %v720 = vrot.slane %v710, 7
      %v721 = vrot.slane %v711, 2
      %v722 = vrot.slane %v711, 5
      %vm723 = vcmask 1040384
      %v726 = vsel %vm723, %v708, %v716
      %vm727 = vcmask 1042434
      %v730 = vsel %vm727, %v717, %v718
      %vm731 = vcmask 1041408
      %v732 = vsel %vm731, %v726, %v730
      %vm733 = vcmask 1044484
      %v736 = vsel %vm733, %v719, %v720
      %vm737 = vcmask 1046534
      %v740 = vsel %vm737, %v721, %v722
      %vm741 = vcmask 1045508
      %v742 = vsel %vm741, %v736, %v740
      %vm743 = vcmask 1043456
      %v744 = vsel %vm743, %v732, %v742
      %vm746 = vcmask 1041409
      %v747 = vsel %vm746, %v708, %v716
      %vm748 = vcmask 1043459
      %v749 = vsel %vm748, %v717, %v718
      %vm750 = vcmask 1042433
      %v751 = vsel %vm750, %v747, %v749
      %vm752 = vcmask 1045509
      %v753 = vsel %vm752, %v719, %v720
      %vm754 = vcmask 1046528
      %v755 = vsel %vm754, %v722, %v721
      %vm756 = vcmask 1046533
      %v757 = vsel %vm756, %v753, %v755
      %vm758 = vcmask 1044481
      %v759 = vsel %vm758, %v751, %v757
      %v761 = vrot.slane %v759, 1
      %v762 = vsel %vm727, %v708, %v716
      %v763 = vsel %vm733, %v717, %v718
      %vm764 = vcmask 1043458
      %v765 = vsel %vm764, %v762, %v763
      %v766 = vsel %vm737, %v719, %v720
      %v767 = vsel %vm723, %v721, %v722
      %vm768 = vcmask 1045504
      %v769 = vsel %vm768, %v767, %v766
      %vm770 = vcmask 1045506
      %v771 = vsel %vm770, %v765, %v769
      %v773 = vrot.slane %v771, 2
      %v774 = vsel %vm748, %v708, %v716
      %v775 = vsel %vm752, %v717, %v718
      %vm776 = vcmask 1044483
      %v777 = vsel %vm776, %v774, %v775
      %v778 = vsel %vm754, %v720, %v719
      %v779 = vsel %vm746, %v721, %v722
      %vm780 = vcmask 1046529
      %v781 = vsel %vm780, %v779, %v778
      %vm782 = vcmask 1046531
      %v783 = vsel %vm782, %v777, %v781
      %v785 = vrot.slane %v783, 3
      %v786 = vunpack.c.l.b16 %v744
      %v787 = vunpack.c.h.b16 %v744
      %v788 = vpack.i.b16 %v787, %v786
      %v789 = vunpack.c.l.b16 %v788
      %v790 = vunpack.c.h.b16 %v788
      %v791 = vpack.i.b16 %v790, %v789
      %v792 = vunpack.c.l.b16 %v791
      %v793 = vunpack.c.h.b16 %v791
      %v794 = vpack.i.b16 %v793, %v792
      %v795 = vunpack.c.l.b16 %v761
      %v796 = vunpack.c.h.b16 %v761
      %v797 = vpack.i.b16 %v796, %v795
      %v798 = vunpack.c.l.b16 %v797
      %v799 = vunpack.c.h.b16 %v797
      %v800 = vpack.i.b16 %v799, %v798
      %v801 = vunpack.c.l.b16 %v800
      %v802 = vunpack.c.h.b16 %v800
      %v803 = vpack.i.b16 %v802, %v801
      %v804 = vunpack.c.l.b16 %v773
      %v805 = vunpack.c.h.b16 %v773
      %v806 = vpack.i.b16 %v805, %v804
      %v807 = vunpack.c.l.b16 %v806
      %v808 = vunpack.c.h.b16 %v806
      %v809 = vpack.i.b16 %v808, %v807
      %v810 = vunpack.c.l.b16 %v809
      %v811 = vunpack.c.h.b16 %v809
      %v812 = vpack.i.b16 %v811, %v810
      %v813 = vunpack.c.l.b16 %v785
      %v814 = vunpack.c.h.b16 %v785
      %v815 = vpack.i.b16 %v814, %v813
      %v816 = vunpack.c.l.b16 %v815
      %v817 = vunpack.c.h.b16 %v815
      %v818 = vpack.i.b16 %v817, %v816
      %v819 = vunpack.c.l.b16 %v818
      %v820 = vunpack.c.h.b16 %v818
      %v821 = vpack.i.b16 %v820, %v819
      %v822 = vunpack.c.l.b16 %v794
      %v823 = vunpack.c.h.b16 %v794
      %v824 = vunpack.c.l.b16 %v803
      %v825 = vunpack.c.h.b16 %v803
      %v826 = vunpack.c.l.b16 %v812
      %v827 = vunpack.c.h.b16 %v812
      %v828 = vunpack.c.l.b16 %v821
      %v829 = vunpack.c.h.b16 %v821
      %v830 = vpack.c.b16 %v822, %v822
      %v831 = vpack.c.b16 %v823, %v823
      %v832 = vpack.c.b16 %v824, %v824
      %v833 = vpack.c.b16 %v825, %v825
      %v834 = vpack.c.b16 %v826, %v826
      %v835 = vpack.c.b16 %v827, %v827
      %v836 = vpack.c.b16 %v828, %v828
      %v837 = vpack.c.b16 %v829, %v829
      %846 = vst [vmem:[#allocation2] sm:$0xf] %v830
      %847 = vst [vmem:[#allocation2 + $0x4] sm:$0xf] %v831
      %848 = vst [vmem:[#allocation2 + $0x8] sm:$0xf] %v832
      %849 = vst [vmem:[#allocation2 + $0xc] sm:$0xf] %v833
      %850 = vst [vmem:[#allocation2 + $0x10] sm:$0xf] %v834
      %851 = vst [vmem:[#allocation2 + $0x14] sm:$0xf] %v835
      %852 = vst [vmem:[#allocation2 + $0x18] sm:$0xf] %v836
      %853 = vst [vmem:[#allocation2 + $0x1c] sm:$0xf] %v837
    $region53: #{tpu_custom_call.1} parent=1 // pred_fallthru
      _
    %v854 = vld [vmem:[#allocation2] sm:$0xf]
    %v855 = vld [vmem:[#allocation2 + $0x4] sm:$0xf]
    %v856 = vld [vmem:[#allocation2 + $0x8] sm:$0xf]
    %v857 = vld [vmem:[#allocation2 + $0xc] sm:$0xf]
    %v858 = vld [vmem:[#allocation2 + $0x10] sm:$0xf]
    %v859 = vld [vmem:[#allocation2 + $0x14] sm:$0xf]
    %v860 = vld [vmem:[#allocation2 + $0x18] sm:$0xf]
    %v861 = vld [vmem:[#allocation2 + $0x1c] sm:$0xf]
    %v862 = vld [vmem:[#allocation11] sm:$0xf]
    %v863 = vld [vmem:[#allocation11 + $0x4] sm:$0xf]
    %v864 = vld [vmem:[#allocation11 + $0x8] sm:$0xf]
    %v865 = vld [vmem:[#allocation11 + $0xc] sm:$0xf]
    %v866 = vld [vmem:[#allocation11 + $0x10] sm:$0xf]
    %v867 = vld [vmem:[#allocation11 + $0x14] sm:$0xf]
    %v868 = vld [vmem:[#allocation11 + $0x18] sm:$0xf]
    %v869 = vld [vmem:[#allocation11 + $0x1c] sm:$0xf]
    %v870 = vld [vmem:[#allocation11 + $0x20] sm:$0xf]
    %v871 = vld [vmem:[#allocation11 + $0x24] sm:$0xf]
    %v872 = vld [vmem:[#allocation11 + $0x28] sm:$0xf]
    %v873 = vld [vmem:[#allocation11 + $0x2c] sm:$0xf]
    %v874 = vld [vmem:[#allocation11 + $0x30] sm:$0xf]
    %v875 = vld [vmem:[#allocation11 + $0x34] sm:$0xf]
    %v876 = vld [vmem:[#allocation11 + $0x38] sm:$0xf]
    %v877 = vld [vmem:[#allocation11 + $0x3c] sm:$0xf]
    %v878 = vld [vmem:[%s6] sm:$0x1]
    %v880 = vperm.slane %v878, 0
    %v890 = vunpack.c.l.b16 %v854
    %v891 = vunpack.c.l.b16 %v855
    %v892 = vunpack.c.l.b16 %v856
    %v893 = vunpack.c.l.b16 %v857
    %v894 = vunpack.c.l.b16 %v858
    %v895 = vunpack.c.l.b16 %v859
    %v896 = vunpack.c.l.b16 %v860
    %v897 = vunpack.c.l.b16 %v861
    %v898 = vpack.c.b16 %v891, %v890
    %v899 = vpack.c.b16 %v893, %v892
    %v900 = vpack.c.b16 %v895, %v894
    %v901 = vpack.c.b16 %v897, %v896
    %v922 = vunpack.c.l.b16 %v862
    %v923 = vunpack.c.l.b16 %v863
    %v924 = vunpack.c.l.b16 %v864
    %v925 = vunpack.c.l.b16 %v865
    %v926 = vunpack.c.l.b16 %v866
    %v927 = vunpack.c.l.b16 %v867
    %v928 = vunpack.c.l.b16 %v868
    %v929 = vunpack.c.l.b16 %v869
    %v930 = vunpack.c.l.b16 %v870
    %v931 = vunpack.c.l.b16 %v871
    %v932 = vunpack.c.l.b16 %v872
    %v933 = vunpack.c.l.b16 %v873
    %v934 = vunpack.c.l.b16 %v874
    %v935 = vunpack.c.l.b16 %v875
    %v936 = vunpack.c.l.b16 %v876
    %v937 = vunpack.c.l.b16 %v877
    %v938 = vpack.c.b16 %v923, %v922
    %v939 = vpack.c.b16 %v925, %v924
    %v940 = vpack.c.b16 %v927, %v926
    %v941 = vpack.c.b16 %v929, %v928
    %v942 = vpack.c.b16 %v931, %v930
    %v943 = vpack.c.b16 %v933, %v932
    %v944 = vpack.c.b16 %v935, %v934
    %v945 = vpack.c.b16 %v937, %v936
    %954 = vmatpush.bf16.msra.mxu0 %v945
    %955 = vmatpush.bf16.msra.mxu0 %v944
    %956 = vmatpush.bf16.msra.mxu0 %v943
    %957 = vmatpush.bf16.msra.mxu0 %v942
    %958 = vmatpush.bf16.msra.mxu0 %v941
    %959 = vmatpush.bf16.msra.mxu0 %v940
    %960 = vmatpush.bf16.msra.mxu0 %v939
    %961 = vmatpush.bf16.msra.mxu0 %v938
    %962 = vmatmul.bf16.gmra.mxu0 %v898
    %v963 = vpop.f32.mrf.mxu0
    %v964 = vadd.f32 %v880, %v963
    %v965 = vpop.f32.mrf.mxu0
    %v966 = vadd.f32 %v880, %v965
    %967 = vmatmul.bf16.gmra.mxu0 %v899
    %v968 = vpop.f32.mrf.mxu0
    %v969 = vadd.f32 %v880, %v968
    %v970 = vpop.f32.mrf.mxu0
    %v971 = vadd.f32 %v880, %v970
    %972 = vmatmul.bf16.gmra.mxu0 %v900
    %v973 = vpop.f32.mrf.mxu0
    %v974 = vadd.f32 %v880, %v973
    %v975 = vpop.f32.mrf.mxu0
    %v976 = vadd.f32 %v880, %v975
    %977 = vmatmul.bf16.gmra.mxu0 %v901
    %v978 = vpop.f32.mrf.mxu0
    %v979 = vadd.f32 %v880, %v978
    %v980 = vpop.f32.mrf.mxu0
    %v981 = vadd.f32 %v880, %v980
    %982 = vdwg.mxu0
    %983 = vst [vmem:[#allocation12] sm:$0xff] %v964
    %984 = vst [vmem:[#allocation12 + $0x8] sm:$0xff] %v966
    %985 = vst [vmem:[#allocation12 + $0x10] sm:$0xff] %v969
    %986 = vst [vmem:[#allocation12 + $0x18] sm:$0xff] %v971
    %987 = vst [vmem:[#allocation12 + $0x20] sm:$0xff] %v974
    %988 = vst [vmem:[#allocation12 + $0x28] sm:$0xff] %v976
    %989 = vst [vmem:[#allocation12 + $0x30] sm:$0xff] %v979
    %990 = vst [vmem:[#allocation12 + $0x38] sm:$0xff] %v981
    // Predicated region
    $region54: #{tpu_custom_call.1} parent=1 // pred_check
      _
    $region55: #{tpu_custom_call.1} parent=1 // pred_check_branch
      %992 = sbr.rel (0) target = $region57
    $region56: #{tpu_custom_call.1} parent=1 // pred_region
      %994 = vsyncadd [#allocation5], 0
      %s995 = sshll.u32 [#allocation12], 4
      %s996 = int_to_ptr.vmem [resolvable:$true] %s995
      %s997 = sshll.u32 %s7, 4
      %s998 = int_to_ptr.hbm [resolvable:$true] %s997
      %1003 = dma.vmem_to_hbm [thread:$0]  %s996, 1024, %s998, [#allocation5], 128, 128, 8
    $region57: #{tpu_custom_call.1} parent=1 // pred_fallthru
      _
    // Predicated region
    $region58: #{tpu_custom_call.1} parent=1 // pred_check
      _
    $region59: #{tpu_custom_call.1} parent=1 // pred_check_branch
      %1005 = sbr.rel (0) target = $region61
    $region60: #{tpu_custom_call.1} parent=1 // pred_region
      %1007 = dma.done [#allocation5], 1024
    $region61: #{tpu_custom_call.1} parent=1 // pred_fallthru
      _
    %1008 = vsyncpa [#allocation4], 1
    %1009 = vsyncpa [#allocation7], 1
    %1010 = vsyncpa [#allocation10], 1
    %1011 = vsyncpa [#allocation5], 1

// kernel: tpu_custom_call.1
$region0: #{tpu_custom_call.1}
  #allocation0 [shape = 'u32[]', space=smem, size = 0x4, offset = 0x4, fixed_abs, tag = 'smem constant byte address 0x4 - core index']
  #allocation1 [shape = 'u32[72,128]{1,0:T(1,128)}', space=vmem, size = 0x9000, scoped, tag = 'internal scratch']
  #allocation2 [shape = 'bf16[64,128]{1,0:T(8,128)(2,1)}', space=vmem, size = 0x4000, scoped, tag = 'scratch operand']
  %s0 = inlined_call_operand.hbm [shape: bf16[8,128], index: 0, kind: input, shape index: {}]
  %s1 = inlined_call_operand.hbm [shape: bf16[128,128], index: 1, kind: input, shape index: {}]
  %s2 = inlined_call_operand.vmem [shape: f32[1,128], index: 2, kind: input, shape index: {}]
  %s3 = inlined_call_operand.hbm [shape: bf16[128,1024], index: 3, kind: input, shape index: {}]
  %s4 = inlined_call_operand.hbm [shape: f32[1,1024], index: 4, kind: input, shape index: {}]
  %s5 = inlined_call_operand.hbm [shape: bf16[128,128], index: 5, kind: input, shape index: {}]
  %s6 = inlined_call_operand.vmem [shape: f32[1,128], index: 6, kind: input, shape index: {}]
  %s7 = inlined_call_operand.hbm [shape: f32[64,128], index: 7, kind: output, shape index: {}]
  %s8 = sld [smem:[#allocation0]]
  $region62: #{tpu_custom_call.1} parent=0
    _
  %s10 = ssub.s32 1, %s8
  %s11 = scalar_select 0, %s10, %s8
  $region1: #{tpu_custom_call.1} parent=0
    #allocation3 [shape = 'u8[2048]{0}', space=vmem, size = 0x800, scoped, tag = 'input window, operand 0, single buffered']
    #allocation4 [shape = 's32[1]{0}', space=sflag, size = 0x4, scoped, tag = 'scoped memory for tpu_custom_call.1']
    #allocation5 [shape = 's32[1]{0}', space=sflag, size = 0x4, scoped, tag = 'scoped memory for tpu_custom_call.1']
    #allocation6 [shape = 'u8[32768]{0}', space=vmem, size = 0x8000, scoped, tag = 'input window, operand 1, single buffered']
    #allocation7 [shape = 's32[1]{0}', space=sflag, size = 0x4, scoped, tag = 'scoped memory for tpu_custom_call.1']
    #allocation8 [shape = 'u8[262144]{0}', space=vmem, size = 0x40000, scoped, tag = 'input window, operand 3, single buffered']
    #allocation9 [shape = 'u8[4096]{0}', space=vmem, size = 0x1000, scoped, tag = 'input window, operand 4, single buffered']
    #allocation10 [shape = 's32[1]{0}', space=sflag, size = 0x4, scoped, tag = 'scoped memory for tpu_custom_call.1']
    #allocation11 [shape = 'u8[32768]{0}', space=vmem, size = 0x8000, scoped, tag = 'input window, operand 5, single buffered']
    #allocation12 [shape = 'u8[32768]{0}', space=vmem, size = 0x8000, scoped, tag = 'output window, operand 0, single buffered']
    %12 = vsyncpa [#allocation4], 0
    %13 = vsyncpa [#allocation7], 0
    %14 = vsyncpa [#allocation10], 0
    %15 = vsyncpa [#allocation5], 0
    // Predicated region
    $region2: #{tpu_custom_call.1} parent=1 // pred_check
      _
    $region3: #{tpu_custom_call.1} parent=1 // pred_check_branch
      %17 = sbr.rel (0) target = $region5
    $region4: #{tpu_custom_call.1} parent=1 // pred_region
      %19 = vsyncadd [#allocation4], 0
      %s21 = sshll.u32 %s0, 4
      %s22 = int_to_ptr.hbm [resolvable:$true] %s21
      %s23 = sshll.u32 [#allocation3], 4
      %s24 = int_to_ptr.vmem [resolvable:$true] %s23
      %26 = dma.hbm_to_vmem [thread:$0]  %s22, 64, %s24, [#allocation4]
    $region5: #{tpu_custom_call.1} parent=1 // pred_fallthru
      _
    // Predicated region
    $region6: #{tpu_custom_call.1} parent=1 // pred_check
      _
    $region7: #{tpu_custom_call.1} parent=1 // pred_check_branch
      %28 = sbr.rel (0) target = $region9
    $region8: #{tpu_custom_call.1} parent=1 // pred_region
      %30 = vsyncadd [#allocation7], 0
      %s31 = sshll.u32 %s1, 4
      %s32 = int_to_ptr.hbm [resolvable:$true] %s31
      %s33 = sshll.u32 [#allocation6], 4
      %s34 = int_to_ptr.vmem [resolvable:$true] %s33
      %39 = dma.hbm_to_vmem [thread:$0]  %s32, 1024, %s34, [#allocation7], 64, 64, 4
    $region9: #{tpu_custom_call.1} parent=1 // pred_fallthru
      _
    // Predicated region
    $region10: #{tpu_custom_call.1} parent=1 // pred_check
      _
    $region11: #{tpu_custom_call.1} parent=1 // pred_check_branch
      %41 = sbr.rel (0) target = $region13
    $region12: #{tpu_custom_call.1} parent=1 // pred_region
      _
    $region13: #{tpu_custom_call.1} parent=1 // pred_fallthru
      _
    // Predicated region
    $region14: #{tpu_custom_call.1} parent=1 // pred_check
      _
    $region15: #{tpu_custom_call.1} parent=1 // pred_check_branch
      %43 = sbr.rel (0) target = $region17
    $region16: #{tpu_custom_call.1} parent=1 // pred_region
      %45 = vsyncadd [#allocation7], 0
      %s46 = sshll.u32 %s3, 4
      %s47 = int_to_ptr.hbm [resolvable:$true] %s46
      %s48 = sshll.u32 [#allocation8], 4
      %s49 = int_to_ptr.vmem [resolvable:$true] %s48
      %54 = dma.hbm_to_vmem [thread:$0]  %s47, 8192, %s49, [#allocation7], 512, 512, 32
    $region17: #{tpu_custom_call.1} parent=1 // pred_fallthru
      _
    // Predicated region
    $region18: #{tpu_custom_call.1} parent=1 // pred_check
      _
    $region19: #{tpu_custom_call.1} parent=1 // pred_check_branch
      %56 = sbr.rel (0) target = $region21
    $region20: #{tpu_custom_call.1} parent=1 // pred_region
      %58 = vsyncadd [#allocation10], 0
      %s60 = sshll.u32 %s4, 4
      %s61 = int_to_ptr.hbm [resolvable:$true] %s60
      %s62 = sshll.u32 [#allocation9], 4
      %s63 = int_to_ptr.vmem [resolvable:$true] %s62
      %65 = dma.hbm_to_vmem [thread:$0]  %s61, 128, %s63, [#allocation10]
    $region21: #{tpu_custom_call.1} parent=1 // pred_fallthru
      _
    // Predicated region
    $region22: #{tpu_custom_call.1} parent=1 // pred_check
      _
    $region23: #{tpu_custom_call.1} parent=1 // pred_check_branch
      %67 = sbr.rel (0) target = $region25
    $region24: #{tpu_custom_call.1} parent=1 // pred_region
      %69 = vsyncadd [#allocation10], 0
      %s70 = sshll.u32 %s5, 4
      %s71 = int_to_ptr.hbm [resolvable:$true] %s70
      %s72 = sshll.u32 [#allocation11], 4
      %s73 = int_to_ptr.vmem [resolvable:$true] %s72
      %78 = dma.hbm_to_vmem [thread:$0]  %s71, 1024, %s73, [#allocation10], 64, 64, 4
    $region25: #{tpu_custom_call.1} parent=1 // pred_fallthru
      _
    // Predicated region
    $region26: #{tpu_custom_call.1} parent=1 // pred_check
      _
    $region27: #{tpu_custom_call.1} parent=1 // pred_check_branch
      %80 = sbr.rel (0) target = $region29
    $region28: #{tpu_custom_call.1} parent=1 // pred_region
      _
    $region29: #{tpu_custom_call.1} parent=1 // pred_fallthru
      _
    // Predicated region
    $region30: #{tpu_custom_call.1} parent=1 // pred_check
      _
    $region31: #{tpu_custom_call.1} parent=1 // pred_check_branch
      %82 = sbr.rel (0) target = $region33
    $region32: #{tpu_custom_call.1} parent=1 // pred_region
      %84 = dma.done [#allocation4], 64
    $region33: #{tpu_custom_call.1} parent=1 // pred_fallthru
      _
    // Predicated region
    $region34: #{tpu_custom_call.1} parent=1 // pred_check
      _
    $region35: #{tpu_custom_call.1} parent=1 // pred_check_branch
      %86 = sbr.rel (0) target = $region37
    $region36: #{tpu_custom_call.1} parent=1 // pred_region
      %88 = dma.done [#allocation7], 1024
    $region37: #{tpu_custom_call.1} parent=1 // pred_fallthru
      _
    // Predicated region
    $region38: #{tpu_custom_call.1} parent=1 // pred_check
      _
    $region39: #{tpu_custom_call.1} parent=1 // pred_check_branch
      %90 = sbr.rel (0) target = $region41
    $region40: #{tpu_custom_call.1} parent=1 // pred_region
      %92 = dma.done [#allocation7], 8192
    $region41: #{tpu_custom_call.1} parent=1 // pred_fallthru
      _
    // Predicated region
    $region42: #{tpu_custom_call.1} parent=1 // pred_check
      _
    $region43: #{tpu_custom_call.1} parent=1 // pred_check_branch
      %94 = sbr.rel (0) target = $region45
    $region44: #{tpu_custom_call.1} parent=1 // pred_region
      %96 = dma.done [#allocation10], 128
    $region45: #{tpu_custom_call.1} parent=1 // pred_fallthru
      _
    // Predicated region
    $region46: #{tpu_custom_call.1} parent=1 // pred_check
      _
    $region47: #{tpu_custom_call.1} parent=1 // pred_check_branch
      %98 = sbr.rel (0) target = $region49
    $region48: #{tpu_custom_call.1} parent=1 // pred_region
      %100 = dma.done [#allocation10], 1024
    $region49: #{tpu_custom_call.1} parent=1 // pred_fallthru
      _
    %p101 = scmp.eq.s32.totalorder 0, 0
    // Predicated region
    $region50: #{tpu_custom_call.1} parent=1 // pred_check
      %p102 = pneg %p101
    $region51: #{tpu_custom_call.1} parent=1 // pred_check_branch
      %104 = sbr.rel (%p102) target = $region53
    $region52: #{tpu_custom_call.1} parent=1 // pred_region
      %v105 = vld [vmem:[#allocation3] sm:$0xf]
      %v106 = vld [vmem:[#allocation6] sm:$0xf]
      %v107 = vld [vmem:[#allocation6 + $0x4] sm:$0xf]
      %v108 = vld [vmem:[#allocation6 + $0x8] sm:$0xf]
      %v109 = vld [vmem:[#allocation6 + $0xc] sm:$0xf]
      %v110 = vld [vmem:[#allocation6 + $0x10] sm:$0xf]
      %v111 = vld [vmem:[#allocation6 + $0x14] sm:$0xf]
      %v112 = vld [vmem:[#allocation6 + $0x18] sm:$0xf]
      %v113 = vld [vmem:[#allocation6 + $0x1c] sm:$0xf]
      %v114 = vld [vmem:[#allocation6 + $0x20] sm:$0xf]
      %v115 = vld [vmem:[#allocation6 + $0x24] sm:$0xf]
      %v116 = vld [vmem:[#allocation6 + $0x28] sm:$0xf]
      %v117 = vld [vmem:[#allocation6 + $0x2c] sm:$0xf]
      %v118 = vld [vmem:[#allocation6 + $0x30] sm:$0xf]
      %v119 = vld [vmem:[#allocation6 + $0x34] sm:$0xf]
      %v120 = vld [vmem:[#allocation6 + $0x38] sm:$0xf]
      %v121 = vld [vmem:[#allocation6 + $0x3c] sm:$0xf]
      %v122 = vld [vmem:[%s2] sm:$0x1]
      %v124 = vperm.slane %v122, 0
      %v142 = vunpack.c.l.b16 %v106
      %v143 = vunpack.c.l.b16 %v107
      %v144 = vunpack.c.l.b16 %v108
      %v145 = vunpack.c.l.b16 %v109
      %v146 = vunpack.c.l.b16 %v110
      %v147 = vunpack.c.l.b16 %v111
      %v148 = vunpack.c.l.b16 %v112
      %v149 = vunpack.c.l.b16 %v113
      %v150 = vunpack.c.l.b16 %v114
      %v151 = vunpack.c.l.b16 %v115
      %v152 = vunpack.c.l.b16 %v116
      %v153 = vunpack.c.l.b16 %v117
      %v154 = vunpack.c.l.b16 %v118
      %v155 = vunpack.c.l.b16 %v119
      %v156 = vunpack.c.l.b16 %v120
      %v157 = vunpack.c.l.b16 %v121
      %v158 = vpack.c.b16 %v143, %v142
      %v159 = vpack.c.b16 %v145, %v144
      %v160 = vpack.c.b16 %v147, %v146
      %v161 = vpack.c.b16 %v149, %v148
      %v162 = vpack.c.b16 %v151, %v150
      %v163 = vpack.c.b16 %v153, %v152
      %v164 = vpack.c.b16 %v155, %v154
      %v165 = vpack.c.b16 %v157, %v156
      %174 = vmatpush.bf16.msra.mxu0 %v165
      %175 = vmatpush.bf16.msra.mxu0 %v164
      %176 = vmatpush.bf16.msra.mxu0 %v163
      %177 = vmatpush.bf16.msra.mxu0 %v162
      %178 = vmatpush.bf16.msra.mxu0 %v161
      %179 = vmatpush.bf16.msra.mxu0 %v160
      %180 = vmatpush.bf16.msra.mxu0 %v159
      %181 = vmatpush.bf16.msra.mxu0 %v158
      %182 = vmatmul.bf16.gmra.mxu0 %v105
      %v183 = vpop.f32.mrf.mxu0
      %v184 = vadd.f32 %v124, %v183
      %v185 = vpop.f32.mrf.mxu0
      %186 = vdwg.mxu0
      %v187 = vmul.f32 %v184, %v184
      %188 = vadd.xlane.f32.xlu0 %v187
      %v189 = vpop.xlane.xlu0 %188
      %v190 = vrsqrt.pop %v189
      %v191 = vmul.f32 %v190, %v189
      %v192 = vmul.f32 %v191, %v190
      %v193 = vmul.f32 0.5, %v192
      %v194 = vsub.f32 1.5, %v193
      %v195 = vmul.f32 %v190, %v194
      %vm196 = vweird.f32 %v189
      %vm197 = vweird.f32 %v190
      %vm198 = vmor %vm196, %vm197
      %v199 = vsel %vm198, %v190, %v195
      %v200 = vmul.f32 %v184, %v199
      %v201 = vpack.c.bf16 %v200, %v200
      %v202 = vld [vmem:[#allocation8] sm:$0xff]
      %v203 = vld [vmem:[#allocation8 + $0x8] sm:$0xff]
      %v204 = vld [vmem:[#allocation8 + $0x10] sm:$0xff]
      %v205 = vld [vmem:[#allocation8 + $0x18] sm:$0xff]
      %v206 = vld [vmem:[#allocation8 + $0x20] sm:$0xff]
      %v207 = vld [vmem:[#allocation8 + $0x28] sm:$0xff]
      %v208 = vld [vmem:[#allocation8 + $0x30] sm:$0xff]
      %v209 = vld [vmem:[#allocation8 + $0x38] sm:$0xff]
      %v210 = vld [vmem:[#allocation8 + $0x40] sm:$0xff]
      %v211 = vld [vmem:[#allocation8 + $0x48] sm:$0xff]
      %v212 = vld [vmem:[#allocation8 + $0x50] sm:$0xff]
      %v213 = vld [vmem:[#allocation8 + $0x58] sm:$0xff]
      %v214 = vld [vmem:[#allocation8 + $0x60] sm:$0xff]
      %v215 = vld [vmem:[#allocation8 + $0x68] sm:$0xff]
      %v216 = vld [vmem:[#allocation8 + $0x70] sm:$0xff]
      %v217 = vld [vmem:[#allocation8 + $0x78] sm:$0xff]
      %v218 = vld [vmem:[#allocation8 + $0x80] sm:$0xff]
      %v219 = vld [vmem:[#allocation8 + $0x88] sm:$0xff]
      %v220 = vld [vmem:[#allocation8 + $0x90] sm:$0xff]
      %v221 = vld [vmem:[#allocation8 + $0x98] sm:$0xff]
      %v222 = vld [vmem:[#allocation8 + $0xa0] sm:$0xff]
      %v223 = vld [vmem:[#allocation8 + $0xa8] sm:$0xff]
      %v224 = vld [vmem:[#allocation8 + $0xb0] sm:$0xff]
      %v225 = vld [vmem:[#allocation8 + $0xb8] sm:$0xff]
      %v226 = vld [vmem:[#allocation8 + $0xc0] sm:$0xff]
      %v227 = vld [vmem:[#allocation8 + $0xc8] sm:$0xff]
      %v228 = vld [vmem:[#allocation8 + $0xd0] sm:$0xff]
      %v229 = vld [vmem:[#allocation8 + $0xd8] sm:$0xff]
      %v230 = vld [vmem:[#allocation8 + $0xe0] sm:$0xff]
      %v231 = vld [vmem:[#allocation8 + $0xe8] sm:$0xff]
      %v232 = vld [vmem:[#allocation8 + $0xf0] sm:$0xff]
      %v233 = vld [vmem:[#allocation8 + $0xf8] sm:$0xff]
      %v234 = vld [vmem:[#allocation8 + $0x100] sm:$0xff]
      %v235 = vld [vmem:[#allocation8 + $0x108] sm:$0xff]
      %v236 = vld [vmem:[#allocation8 + $0x110] sm:$0xff]
      %v237 = vld [vmem:[#allocation8 + $0x118] sm:$0xff]
      %v238 = vld [vmem:[#allocation8 + $0x120] sm:$0xff]
      %v239 = vld [vmem:[#allocation8 + $0x128] sm:$0xff]
      %v240 = vld [vmem:[#allocation8 + $0x130] sm:$0xff]
      %v241 = vld [vmem:[#allocation8 + $0x138] sm:$0xff]
      %v242 = vld [vmem:[#allocation8 + $0x140] sm:$0xff]
      %v243 = vld [vmem:[#allocation8 + $0x148] sm:$0xff]
      %v244 = vld [vmem:[#allocation8 + $0x150] sm:$0xff]
      %v245 = vld [vmem:[#allocation8 + $0x158] sm:$0xff]
      %v246 = vld [vmem:[#allocation8 + $0x160] sm:$0xff]
      %v247 = vld [vmem:[#allocation8 + $0x168] sm:$0xff]
      %v248 = vld [vmem:[#allocation8 + $0x170] sm:$0xff]
      %v249 = vld [vmem:[#allocation8 + $0x178] sm:$0xff]
      %v250 = vld [vmem:[#allocation8 + $0x180] sm:$0xff]
      %v251 = vld [vmem:[#allocation8 + $0x188] sm:$0xff]
      %v252 = vld [vmem:[#allocation8 + $0x190] sm:$0xff]
      %v253 = vld [vmem:[#allocation8 + $0x198] sm:$0xff]
      %v254 = vld [vmem:[#allocation8 + $0x1a0] sm:$0xff]
      %v255 = vld [vmem:[#allocation8 + $0x1a8] sm:$0xff]
      %v256 = vld [vmem:[#allocation8 + $0x1b0] sm:$0xff]
      %v257 = vld [vmem:[#allocation8 + $0x1b8] sm:$0xff]
      %v258 = vld [vmem:[#allocation8 + $0x1c0] sm:$0xff]
      %v259 = vld [vmem:[#allocation8 + $0x1c8] sm:$0xff]
      %v260 = vld [vmem:[#allocation8 + $0x1d0] sm:$0xff]
      %v261 = vld [vmem:[#allocation8 + $0x1d8] sm:$0xff]
      %v262 = vld [vmem:[#allocation8 + $0x1e0] sm:$0xff]
      %v263 = vld [vmem:[#allocation8 + $0x1e8] sm:$0xff]
      %v264 = vld [vmem:[#allocation8 + $0x1f0] sm:$0xff]
      %v265 = vld [vmem:[#allocation8 + $0x1f8] sm:$0xff]
      %v266 = vld [vmem:[#allocation9] sm:$0xff]
      %v268 = vperm.slane %v266, 0
      %v269 = vperm.slane %v266, 1
      %v270 = vperm.slane %v266, 2
      %v271 = vperm.slane %v266, 3
      %v272 = vperm.slane %v266, 4
      %v273 = vperm.slane %v266, 5
      %v274 = vperm.slane %v266, 6
      %v275 = vperm.slane %v266, 7
      %v348 = vunpack.c.l.b16 %v202
      %v349 = vunpack.c.h.b16 %v202
      %v350 = vunpack.c.l.b16 %v203
      %v351 = vunpack.c.h.b16 %v203
      %v352 = vunpack.c.l.b16 %v204
      %v353 = vunpack.c.h.b16 %v204
      %v354 = vunpack.c.l.b16 %v205
      %v355 = vunpack.c.h.b16 %v205
      %v356 = vunpack.c.l.b16 %v206
      %v357 = vunpack.c.h.b16 %v206
      %v358 = vunpack.c.l.b16 %v207
      %v359 = vunpack.c.h.b16 %v207
      %v360 = vunpack.c.l.b16 %v208
      %v361 = vunpack.c.h.b16 %v208
      %v362 = vunpack.c.l.b16 %v209
      %v363 = vunpack.c.h.b16 %v209
      %v364 = vunpack.c.l.b16 %v210
      %v365 = vunpack.c.h.b16 %v210
      %v366 = vunpack.c.l.b16 %v211
      %v367 = vunpack.c.h.b16 %v211
      %v368 = vunpack.c.l.b16 %v212
      %v369 = vunpack.c.h.b16 %v212
      %v370 = vunpack.c.l.b16 %v213
      %v371 = vunpack.c.h.b16 %v213
      %v372 = vunpack.c.l.b16 %v214
      %v373 = vunpack.c.h.b16 %v214
      %v374 = vunpack.c.l.b16 %v215
      %v375 = vunpack.c.h.b16 %v215
      %v376 = vunpack.c.l.b16 %v216
      %v377 = vunpack.c.h.b16 %v216
      %v378 = vunpack.c.l.b16 %v217
      %v379 = vunpack.c.h.b16 %v217
      %v380 = vunpack.c.l.b16 %v218
      %v381 = vunpack.c.h.b16 %v218
      %v382 = vunpack.c.l.b16 %v219
      %v383 = vunpack.c.h.b16 %v219
      %v384 = vunpack.c.l.b16 %v220
      %v385 = vunpack.c.h.b16 %v220
      %v386 = vunpack.c.l.b16 %v221
      %v387 = vunpack.c.h.b16 %v221
      %v388 = vunpack.c.l.b16 %v222
      %v389 = vunpack.c.h.b16 %v222
      %v390 = vunpack.c.l.b16 %v223
      %v391 = vunpack.c.h.b16 %v223
      %v392 = vunpack.c.l.b16 %v224
      %v393 = vunpack.c.h.b16 %v224
      %v394 = vunpack.c.l.b16 %v225
      %v395 = vunpack.c.h.b16 %v225
      %v396 = vunpack.c.l.b16 %v226
      %v397 = vunpack.c.h.b16 %v226
      %v398 = vunpack.c.l.b16 %v227
      %v399 = vunpack.c.h.b16 %v227
      %v400 = vunpack.c.l.b16 %v228
      %v401 = vunpack.c.h.b16 %v228
      %v402 = vunpack.c.l.b16 %v229
      %v403 = vunpack.c.h.b16 %v229
      %v404 = vunpack.c.l.b16 %v230
      %v405 = vunpack.c.h.b16 %v230
      %v406 = vunpack.c.l.b16 %v231
      %v407 = vunpack.c.h.b16 %v231
      %v408 = vunpack.c.l.b16 %v232
      %v409 = vunpack.c.h.b16 %v232
      %v410 = vunpack.c.l.b16 %v233
      %v411 = vunpack.c.h.b16 %v233
      %v412 = vunpack.c.l.b16 %v234
      %v413 = vunpack.c.h.b16 %v234
      %v414 = vunpack.c.l.b16 %v235
      %v415 = vunpack.c.h.b16 %v235
      %v416 = vunpack.c.l.b16 %v236
      %v417 = vunpack.c.h.b16 %v236
      %v418 = vunpack.c.l.b16 %v237
      %v419 = vunpack.c.h.b16 %v237
      %v420 = vunpack.c.l.b16 %v238
      %v421 = vunpack.c.h.b16 %v238
      %v422 = vunpack.c.l.b16 %v239
      %v423 = vunpack.c.h.b16 %v239
      %v424 = vunpack.c.l.b16 %v240
      %v425 = vunpack.c.h.b16 %v240
      %v426 = vunpack.c.l.b16 %v241
      %v427 = vunpack.c.h.b16 %v241
      %v428 = vunpack.c.l.b16 %v242
      %v429 = vunpack.c.h.b16 %v242
      %v430 = vunpack.c.l.b16 %v243
      %v431 = vunpack.c.h.b16 %v243
      %v432 = vunpack.c.l.b16 %v244
      %v433 = vunpack.c.h.b16 %v244
      %v434 = vunpack.c.l.b16 %v245
      %v435 = vunpack.c.h.b16 %v245
      %v436 = vunpack.c.l.b16 %v246
      %v437 = vunpack.c.h.b16 %v246
      %v438 = vunpack.c.l.b16 %v247
      %v439 = vunpack.c.h.b16 %v247
      %v440 = vunpack.c.l.b16 %v248
      %v441 = vunpack.c.h.b16 %v248
      %v442 = vunpack.c.l.b16 %v249
      %v443 = vunpack.c.h.b16 %v249
      %v444 = vunpack.c.l.b16 %v250
      %v445 = vunpack.c.h.b16 %v250
      %v446 = vunpack.c.l.b16 %v251
      %v447 = vunpack.c.h.b16 %v251
      %v448 = vunpack.c.l.b16 %v252
      %v449 = vunpack.c.h.b16 %v252
      %v450 = vunpack.c.l.b16 %v253
      %v451 = vunpack.c.h.b16 %v253
      %v452 = vunpack.c.l.b16 %v254
      %v453 = vunpack.c.h.b16 %v254
      %v454 = vunpack.c.l.b16 %v255
      %v455 = vunpack.c.h.b16 %v255
      %v456 = vunpack.c.l.b16 %v256
      %v457 = vunpack.c.h.b16 %v256
      %v458 = vunpack.c.l.b16 %v257
      %v459 = vunpack.c.h.b16 %v257
      %v460 = vunpack.c.l.b16 %v258
      %v461 = vunpack.c.h.b16 %v258
      %v462 = vunpack.c.l.b16 %v259
      %v463 = vunpack.c.h.b16 %v259
      %v464 = vunpack.c.l.b16 %v260
      %v465 = vunpack.c.h.b16 %v260
      %v466 = vunpack.c.l.b16 %v261
      %v467 = vunpack.c.h.b16 %v261
      %v468 = vunpack.c.l.b16 %v262
      %v469 = vunpack.c.h.b16 %v262
      %v470 = vunpack.c.l.b16 %v263
      %v471 = vunpack.c.h.b16 %v263
      %v472 = vunpack.c.l.b16 %v264
      %v473 = vunpack.c.h.b16 %v264
      %v474 = vunpack.c.l.b16 %v265
      %v475 = vunpack.c.h.b16 %v265
      %v476 = vpack.c.b16 %v356, %v348
      %v477 = vpack.c.b16 %v357, %v349
      %v478 = vpack.c.b16 %v358, %v350
      %v479 = vpack.c.b16 %v359, %v351
      %v480 = vpack.c.b16 %v360, %v352
      %v481 = vpack.c.b16 %v361, %v353
      %v482 = vpack.c.b16 %v362, %v354
      %v483 = vpack.c.b16 %v363, %v355
      %v484 = vpack.c.b16 %v372, %v364
      %v485 = vpack.c.b16 %v373, %v365
      %v486 = vpack.c.b16 %v374, %v366
      %v487 = vpack.c.b16 %v375, %v367
      %v488 = vpack.c.b16 %v376, %v368
      %v489 = vpack.c.b16 %v377, %v369
      %v490 = vpack.c.b16 %v378, %v370
      %v491 = vpack.c.b16 %v379, %v371
      %v492 = vpack.c.b16 %v388, %v380
      %v493 = vpack.c.b16 %v389, %v381
      %v494 = vpack.c.b16 %v390, %v382
      %v495 = vpack.c.b16 %v391, %v383
      %v496 = vpack.c.b16 %v392, %v384
      %v497 = vpack.c.b16 %v393, %v385
      %v498 = vpack.c.b16 %v394, %v386
      %v499 = vpack.c.b16 %v395, %v387
      %v500 = vpack.c.b16 %v404, %v396
      %v501 = vpack.c.b16 %v405, %v397
      %v502 = vpack.c.b16 %v406, %v398
      %v503 = vpack.c.b16 %v407, %v399
      %v504 = vpack.c.b16 %v408, %v400
      %v505 = vpack.c.b16 %v409, %v401
      %v506 = vpack.c.b16 %v410, %v402
      %v507 = vpack.c.b16 %v411, %v403
      %v508 = vpack.c.b16 %v420, %v412
      %v509 = vpack.c.b16 %v421, %v413
      %v510 = vpack.c.b16 %v422, %v414
      %v511 = vpack.c.b16 %v423, %v415
      %v512 = vpack.c.b16 %v424, %v416
      %v513 = vpack.c.b16 %v425, %v417
      %v514 = vpack.c.b16 %v426, %v418
      %v515 = vpack.c.b16 %v427, %v419
      %v516 = vpack.c.b16 %v436, %v428
      %v517 = vpack.c.b16 %v437, %v429
      %v518 = vpack.c.b16 %v438, %v430
      %v519 = vpack.c.b16 %v439, %v431
      %v520 = vpack.c.b16 %v440, %v432
      %v521 = vpack.c.b16 %v441, %v433
      %v522 = vpack.c.b16 %v442, %v434
      %v523 = vpack.c.b16 %v443, %v435
      %v524 = vpack.c.b16 %v452, %v444
      %v525 = vpack.c.b16 %v453, %v445
      %v526 = vpack.c.b16 %v454, %v446
      %v527 = vpack.c.b16 %v455, %v447
      %v528 = vpack.c.b16 %v456, %v448
      %v529 = vpack.c.b16 %v457, %v449
      %v530 = vpack.c.b16 %v458, %v450
      %v531 = vpack.c.b16 %v459, %v451
      %v532 = vpack.c.b16 %v468, %v460
      %v533 = vpack.c.b16 %v469, %v461
      %v534 = vpack.c.b16 %v470, %v462
      %v535 = vpack.c.b16 %v471, %v463
      %v536 = vpack.c.b16 %v472, %v464
      %v537 = vpack.c.b16 %v473, %v465
      %v538 = vpack.c.b16 %v474, %v466
      %v539 = vpack.c.b16 %v475, %v467
      %604 = vmatpush.bf16.msra.mxu0 %v532
      %605 = vmatpush.bf16.msra.mxu0 %v524
      %606 = vmatpush.bf16.msra.mxu0 %v516
      %607 = vmatpush.bf16.msra.mxu0 %v508
      %608 = vmatpush.bf16.msra.mxu0 %v500
      %609 = vmatpush.bf16.msra.mxu0 %v492
      %610 = vmatpush.bf16.msra.mxu0 %v484
      %611 = vmatpush.bf16.msra.mxu0 %v476
      %612 = vmatmul.bf16.gmra.mxu0 %v201
      %v613 = vpop.f32.mrf.mxu0
      %v614 = vadd.f32 %v268, %v613
      %v615 = vpop.f32.mrf.mxu0
      %616 = vdwg.mxu0
      %617 = vmatpush.bf16.msra.mxu0 %v533
      %618 = vmatpush.bf16.msra.mxu0 %v525
      %619 = vmatpush.bf16.msra.mxu0 %v517
      %620 = vmatpush.bf16.msra.mxu0 %v509
      %621 = vmatpush.bf16.msra.mxu0 %v501
      %622 = vmatpush.bf16.msra.mxu0 %v493
      %623 = vmatpush.bf16.msra.mxu0 %v485
      %624 = vmatpush.bf16.msra.mxu0 %v477
      %625 = vmatmul.bf16.gmra.mxu0 %v201
      %v626 = vpop.f32.mrf.mxu0
      %v627 = vadd.f32 %v269, %v626
      %v628 = vpop.f32.mrf.mxu0
      %629 = vdwg.mxu0
      %630 = vmatpush.bf16.msra.mxu0 %v534
      %631 = vmatpush.bf16.msra.mxu0 %v526
      %632 = vmatpush.bf16.msra.mxu0 %v518
      %633 = vmatpush.bf16.msra.mxu0 %v510
      %634 = vmatpush.bf16.msra.mxu0 %v502
      %635 = vmatpush.bf16.msra.mxu0 %v494
      %636 = vmatpush.bf16.msra.mxu0 %v486
      %637 = vmatpush.bf16.msra.mxu0 %v478
      %638 = vmatmul.bf16.gmra.mxu0 %v201
      %v639 = vpop.f32.mrf.mxu0
      %v640 = vadd.f32 %v270, %v639
      %v641 = vpop.f32.mrf.mxu0
      %642 = vdwg.mxu0
      %643 = vmatpush.bf16.msra.mxu0 %v535
      %644 = vmatpush.bf16.msra.mxu0 %v527
      %645 = vmatpush.bf16.msra.mxu0 %v519
      %646 = vmatpush.bf16.msra.mxu0 %v511
      %647 = vmatpush.bf16.msra.mxu0 %v503
      %648 = vmatpush.bf16.msra.mxu0 %v495
      %649 = vmatpush.bf16.msra.mxu0 %v487
      %650 = vmatpush.bf16.msra.mxu0 %v479
      %651 = vmatmul.bf16.gmra.mxu0 %v201
      %v652 = vpop.f32.mrf.mxu0
      %v653 = vadd.f32 %v271, %v652
      %v654 = vpop.f32.mrf.mxu0
      %655 = vdwg.mxu0
      %656 = vmatpush.bf16.msra.mxu0 %v536
      %657 = vmatpush.bf16.msra.mxu0 %v528
      %658 = vmatpush.bf16.msra.mxu0 %v520
      %659 = vmatpush.bf16.msra.mxu0 %v512
      %660 = vmatpush.bf16.msra.mxu0 %v504
      %661 = vmatpush.bf16.msra.mxu0 %v496
      %662 = vmatpush.bf16.msra.mxu0 %v488
      %663 = vmatpush.bf16.msra.mxu0 %v480
      %664 = vmatmul.bf16.gmra.mxu0 %v201
      %v665 = vpop.f32.mrf.mxu0
      %v666 = vadd.f32 %v272, %v665
      %v667 = vpop.f32.mrf.mxu0
      %668 = vdwg.mxu0
      %669 = vmatpush.bf16.msra.mxu0 %v537
      %670 = vmatpush.bf16.msra.mxu0 %v529
      %671 = vmatpush.bf16.msra.mxu0 %v521
      %672 = vmatpush.bf16.msra.mxu0 %v513
      %673 = vmatpush.bf16.msra.mxu0 %v505
      %674 = vmatpush.bf16.msra.mxu0 %v497
      %675 = vmatpush.bf16.msra.mxu0 %v489
      %676 = vmatpush.bf16.msra.mxu0 %v481
      %677 = vmatmul.bf16.gmra.mxu0 %v201
      %v678 = vpop.f32.mrf.mxu0
      %v679 = vadd.f32 %v273, %v678
      %v680 = vpop.f32.mrf.mxu0
      %681 = vdwg.mxu0
      %682 = vmatpush.bf16.msra.mxu0 %v538
      %683 = vmatpush.bf16.msra.mxu0 %v530
      %684 = vmatpush.bf16.msra.mxu0 %v522
      %685 = vmatpush.bf16.msra.mxu0 %v514
      %686 = vmatpush.bf16.msra.mxu0 %v506
      %687 = vmatpush.bf16.msra.mxu0 %v498
      %688 = vmatpush.bf16.msra.mxu0 %v490
      %689 = vmatpush.bf16.msra.mxu0 %v482
      %690 = vmatmul.bf16.gmra.mxu0 %v201
      %v691 = vpop.f32.mrf.mxu0
      %v692 = vadd.f32 %v274, %v691
      %v693 = vpop.f32.mrf.mxu0
      %694 = vdwg.mxu0
      %695 = vmatpush.bf16.msra.mxu0 %v539
      %696 = vmatpush.bf16.msra.mxu0 %v531
      %697 = vmatpush.bf16.msra.mxu0 %v523
      %698 = vmatpush.bf16.msra.mxu0 %v515
      %699 = vmatpush.bf16.msra.mxu0 %v507
      %700 = vmatpush.bf16.msra.mxu0 %v499
      %701 = vmatpush.bf16.msra.mxu0 %v491
      %702 = vmatpush.bf16.msra.mxu0 %v483
      %703 = vmatmul.bf16.gmra.mxu0 %v201
      %v704 = vpop.f32.mrf.mxu0
      %v705 = vadd.f32 %v275, %v704
      %v706 = vpop.f32.mrf.mxu0
      %707 = vdwg.mxu0
      %v708 = vpack.c.bf16 %v627, %v614
      %v709 = vpack.c.bf16 %v653, %v640
      %v710 = vpack.c.bf16 %v679, %v666
      %v711 = vpack.c.bf16 %v705, %v692
      %v716 = vrot.slane %v708, 3
      %v717 = vrot.slane %v709, 6
      %v718 = vrot.slane %v709, 1
      %v719 = vrot.slane %v710, 4
      %v720 = vrot.slane %v710, 7
      %v721 = vrot.slane %v711, 2
      %v722 = vrot.slane %v711, 5
      %vm723 = vcmask 1040384
      %v726 = vsel %vm723, %v708, %v716
      %vm727 = vcmask 1042434
      %v730 = vsel %vm727, %v717, %v718
      %vm731 = vcmask 1041408
      %v732 = vsel %vm731, %v726, %v730
      %vm733 = vcmask 1044484
      %v736 = vsel %vm733, %v719, %v720
      %vm737 = vcmask 1046534
      %v740 = vsel %vm737, %v721, %v722
      %vm741 = vcmask 1045508
      %v742 = vsel %vm741, %v736, %v740
      %vm743 = vcmask 1043456
      %v744 = vsel %vm743, %v732, %v742
      %vm746 = vcmask 1041409
      %v747 = vsel %vm746, %v708, %v716
      %vm748 = vcmask 1043459
      %v749 = vsel %vm748, %v717, %v718
      %vm750 = vcmask 1042433
      %v751 = vsel %vm750, %v747, %v749
      %vm752 = vcmask 1045509
      %v753 = vsel %vm752, %v719, %v720
      %vm754 = vcmask 1046528
      %v755 = vsel %vm754, %v722, %v721
      %vm756 = vcmask 1046533
      %v757 = vsel %vm756, %v753, %v755
      %vm758 = vcmask 1044481
      %v759 = vsel %vm758, %v751, %v757
      %v761 = vrot.slane %v759, 1
      %v762 = vsel %vm727, %v708, %v716
      %v763 = vsel %vm733, %v717, %v718
      %vm764 = vcmask 1043458
      %v765 = vsel %vm764, %v762, %v763
      %v766 = vsel %vm737, %v719, %v720
      %v767 = vsel %vm723, %v721, %v722
      %vm768 = vcmask 1045504
      %v769 = vsel %vm768, %v767, %v766
      %vm770 = vcmask 1045506
      %v771 = vsel %vm770, %v765, %v769
      %v773 = vrot.slane %v771, 2
      %v774 = vsel %vm748, %v708, %v716
      %v775 = vsel %vm752, %v717, %v718
      %vm776 = vcmask 1044483
      %v777 = vsel %vm776, %v774, %v775
      %v778 = vsel %vm754, %v720, %v719
      %v779 = vsel %vm746, %v721, %v722
      %vm780 = vcmask 1046529
      %v781 = vsel %vm780, %v779, %v778
      %vm782 = vcmask 1046531
      %v783 = vsel %vm782, %v777, %v781
      %v785 = vrot.slane %v783, 3
      %v786 = vunpack.c.l.b16 %v744
      %v787 = vunpack.c.h.b16 %v744
      %v788 = vpack.i.b16 %v787, %v786
      %v789 = vunpack.c.l.b16 %v788
      %v790 = vunpack.c.h.b16 %v788
      %v791 = vpack.i.b16 %v790, %v789
      %v792 = vunpack.c.l.b16 %v791
      %v793 = vunpack.c.h.b16 %v791
      %v794 = vpack.i.b16 %v793, %v792
      %v795 = vunpack.c.l.b16 %v761
      %v796 = vunpack.c.h.b16 %v761
      %v797 = vpack.i.b16 %v796, %v795
      %v798 = vunpack.c.l.b16 %v797
      %v799 = vunpack.c.h.b16 %v797
      %v800 = vpack.i.b16 %v799, %v798
      %v801 = vunpack.c.l.b16 %v800
      %v802 = vunpack.c.h.b16 %v800
      %v803 = vpack.i.b16 %v802, %v801
      %v804 = vunpack.c.l.b16 %v773
      %v805 = vunpack.c.h.b16 %v773
      %v806 = vpack.i.b16 %v805, %v804
      %v807 = vunpack.c.l.b16 %v806
      %v808 = vunpack.c.h.b16 %v806
      %v809 = vpack.i.b16 %v808, %v807
      %v810 = vunpack.c.l.b16 %v809
      %v811 = vunpack.c.h.b16 %v809
      %v812 = vpack.i.b16 %v811, %v810
      %v813 = vunpack.c.l.b16 %v785
      %v814 = vunpack.c.h.b16 %v785
      %v815 = vpack.i.b16 %v814, %v813
      %v816 = vunpack.c.l.b16 %v815
      %v817 = vunpack.c.h.b16 %v815
      %v818 = vpack.i.b16 %v817, %v816
      %v819 = vunpack.c.l.b16 %v818
      %v820 = vunpack.c.h.b16 %v818
      %v821 = vpack.i.b16 %v820, %v819
      %v822 = vunpack.c.l.b16 %v794
      %v823 = vunpack.c.h.b16 %v794
      %v824 = vunpack.c.l.b16 %v803
      %v825 = vunpack.c.h.b16 %v803
      %v826 = vunpack.c.l.b16 %v812
      %v827 = vunpack.c.h.b16 %v812
      %v828 = vunpack.c.l.b16 %v821
      %v829 = vunpack.c.h.b16 %v821
      %v830 = vpack.c.b16 %v822, %v822
      %v831 = vpack.c.b16 %v823, %v823
      %v832 = vpack.c.b16 %v824, %v824
      %v833 = vpack.c.b16 %v825, %v825
      %v834 = vpack.c.b16 %v826, %v826
      %v835 = vpack.c.b16 %v827, %v827
      %v836 = vpack.c.b16 %v828, %v828
      %v837 = vpack.c.b16 %v829, %v829
      %846 = vst [vmem:[#allocation2] sm:$0xf] %v830
      %847 = vst [vmem:[#allocation2 + $0x4] sm:$0xf] %v831
      %848 = vst [vmem:[#allocation2 + $0x8] sm:$0xf] %v832
      %849 = vst [vmem:[#allocation2 + $0xc] sm:$0xf] %v833
      %850 = vst [vmem:[#allocation2 + $0x10] sm:$0xf] %v834
      %851 = vst [vmem:[#allocation2 + $0x14] sm:$0xf] %v835
      %852 = vst [vmem:[#allocation2 + $0x18] sm:$0xf] %v836
      %853 = vst [vmem:[#allocation2 + $0x1c] sm:$0xf] %v837
    $region53: #{tpu_custom_call.1} parent=1 // pred_fallthru
      _
    %v854 = vld [vmem:[#allocation2] sm:$0xf]
    %v855 = vld [vmem:[#allocation2 + $0x4] sm:$0xf]
    %v856 = vld [vmem:[#allocation2 + $0x8] sm:$0xf]
    %v857 = vld [vmem:[#allocation2 + $0xc] sm:$0xf]
    %v858 = vld [vmem:[#allocation2 + $0x10] sm:$0xf]
    %v859 = vld [vmem:[#allocation2 + $0x14] sm:$0xf]
    %v860 = vld [vmem:[#allocation2 + $0x18] sm:$0xf]
    %v861 = vld [vmem:[#allocation2 + $0x1c] sm:$0xf]
    %v862 = vld [vmem:[#allocation11] sm:$0xf]
    %v863 = vld [vmem:[#allocation11 + $0x4] sm:$0xf]
    %v864 = vld [vmem:[#allocation11 + $0x8] sm:$0xf]
    %v865 = vld [vmem:[#allocation11 + $0xc] sm:$0xf]
    %v866 = vld [vmem:[#allocation11 + $0x10] sm:$0xf]
    %v867 = vld [vmem:[#allocation11 + $0x14] sm:$0xf]
    %v868 = vld [vmem:[#allocation11 + $0x18] sm:$0xf]
    %v869 = vld [vmem:[#allocation11 + $0x1c] sm:$0xf]
    %v870 = vld [vmem:[#allocation11 + $0x20] sm:$0xf]
    %v871 = vld [vmem:[#allocation11 + $0x24] sm:$0xf]
    %v872 = vld [vmem:[#allocation11 + $0x28] sm:$0xf]
    %v873 = vld [vmem:[#allocation11 + $0x2c] sm:$0xf]
    %v874 = vld [vmem:[#allocation11 + $0x30] sm:$0xf]
    %v875 = vld [vmem:[#allocation11 + $0x34] sm:$0xf]
    %v876 = vld [vmem:[#allocation11 + $0x38] sm:$0xf]
    %v877 = vld [vmem:[#allocation11 + $0x3c] sm:$0xf]
    %v878 = vld [vmem:[%s6] sm:$0x1]
    %v880 = vperm.slane %v878, 0
    %v890 = vunpack.c.l.b16 %v854
    %v891 = vunpack.c.l.b16 %v855
    %v892 = vunpack.c.l.b16 %v856
    %v893 = vunpack.c.l.b16 %v857
    %v894 = vunpack.c.l.b16 %v858
    %v895 = vunpack.c.l.b16 %v859
    %v896 = vunpack.c.l.b16 %v860
    %v897 = vunpack.c.l.b16 %v861
    %v898 = vpack.c.b16 %v891, %v890
    %v899 = vpack.c.b16 %v893, %v892
    %v900 = vpack.c.b16 %v895, %v894
    %v901 = vpack.c.b16 %v897, %v896
    %v922 = vunpack.c.l.b16 %v862
    %v923 = vunpack.c.l.b16 %v863
    %v924 = vunpack.c.l.b16 %v864
    %v925 = vunpack.c.l.b16 %v865
    %v926 = vunpack.c.l.b16 %v866
    %v927 = vunpack.c.l.b16 %v867
    %v928 = vunpack.c.l.b16 %v868
    %v929 = vunpack.c.l.b16 %v869
    %v930 = vunpack.c.l.b16 %v870
    %v931 = vunpack.c.l.b16 %v871
    %v932 = vunpack.c.l.b16 %v872
    %v933 = vunpack.c.l.b16 %v873
    %v934 = vunpack.c.l.b16 %v874
    %v935 = vunpack.c.l.b16 %v875
    %v936 = vunpack.c.l.b16 %v876
    %v937 = vunpack.c.l.b16 %v877
    %v938 = vpack.c.b16 %v923, %v922
    %v939 = vpack.c.b16 %v925, %v924
    %v940 = vpack.c.b16 %v927, %v926
    %v941 = vpack.c.b16 %v929, %v928
    %v942 = vpack.c.b16 %v931, %v930
    %v943 = vpack.c.b16 %v933, %v932
    %v944 = vpack.c.b16 %v935, %v934
    %v945 = vpack.c.b16 %v937, %v936
    %954 = vmatpush.bf16.msra.mxu0 %v945
    %955 = vmatpush.bf16.msra.mxu0 %v944
    %956 = vmatpush.bf16.msra.mxu0 %v943
    %957 = vmatpush.bf16.msra.mxu0 %v942
    %958 = vmatpush.bf16.msra.mxu0 %v941
    %959 = vmatpush.bf16.msra.mxu0 %v940
    %960 = vmatpush.bf16.msra.mxu0 %v939
    %961 = vmatpush.bf16.msra.mxu0 %v938
    %962 = vmatmul.bf16.gmra.mxu0 %v898
    %v963 = vpop.f32.mrf.mxu0
    %v964 = vadd.f32 %v880, %v963
    %v965 = vpop.f32.mrf.mxu0
    %v966 = vadd.f32 %v880, %v965
    %967 = vmatmul.bf16.gmra.mxu0 %v899
    %v968 = vpop.f32.mrf.mxu0
    %v969 = vadd.f32 %v880, %v968
    %v970 = vpop.f32.mrf.mxu0
    %v971 = vadd.f32 %v880, %v970
    %972 = vmatmul.bf16.gmra.mxu0 %v900
    %v973 = vpop.f32.mrf.mxu0
    %v974 = vadd.f32 %v880, %v973
    %v975 = vpop.f32.mrf.mxu0
    %v976 = vadd.f32 %v880, %v975
    %977 = vmatmul.bf16.gmra.mxu0 %v901
    %v978 = vpop.f32.mrf.mxu0
    %v979 = vadd.f32 %v880, %v978
    %v980 = vpop.f32.mrf.mxu0
    %v981 = vadd.f32 %v880, %v980
    %982 = vdwg.mxu0
    %983 = vst [vmem:[#allocation12] sm:$0xff] %v964
    %984 = vst [vmem:[#allocation12 + $0x8] sm:$0xff] %v966
    %985 = vst [vmem:[#allocation12 + $0x10] sm:$0xff] %v969
    %986 = vst [vmem:[#allocation12 + $0x18] sm:$0xff] %v971
    %987 = vst [vmem:[#allocation12 + $0x20] sm:$0xff] %v974
    %988 = vst [vmem:[#allocation12 + $0x28] sm:$0xff] %v976
    %989 = vst [vmem:[#allocation12 + $0x30] sm:$0xff] %v979
    %990 = vst [vmem:[#allocation12 + $0x38] sm:$0xff] %v981
    // Predicated region
    $region54: #{tpu_custom_call.1} parent=1 // pred_check
      _
    $region55: #{tpu_custom_call.1} parent=1 // pred_check_branch
      %992 = sbr.rel (0) target = $region57
    $region56: #{tpu_custom_call.1} parent=1 // pred_region
      %994 = vsyncadd [#allocation5], 0
      %s995 = sshll.u32 [#allocation12], 4
      %s996 = int_to_ptr.vmem [resolvable:$true] %s995
      %s997 = sshll.u32 %s7, 4
      %s998 = int_to_ptr.hbm [resolvable:$true] %s997
      %1003 = dma.vmem_to_hbm [thread:$0]  %s996, 1024, %s998, [#allocation5], 128, 128, 8
    $region57: #{tpu_custom_call.1} parent=1 // pred_fallthru
      _
    // Predicated region
    $region58: #{tpu_custom_call.1} parent=1 // pred_check
      _
    $region59: #{tpu_custom_call.1} parent=1 // pred_check_branch
      %1005 = sbr.rel (0) target = $region61
    $region60: #{tpu_custom_call.1} parent=1 // pred_region
      %1007 = dma.done [#allocation5], 1024
    $region61: #{tpu_custom_call.1} parent=1 // pred_fallthru
      _
    %1008 = vsyncpa [#allocation4], 1
    %1009 = vsyncpa [#allocation7], 1
    %1010 = vsyncpa [#allocation10], 1
    %1011 = vsyncpa [#allocation5], 1

</llo_original>
